<compile_context>
chip_gen: v7x
topology: tpu7x:2x2x1
jax: 0.10.0
libtpu: 0.0.40
codegen_flags: <defaults>
</compile_context>

<pallas_src>
import functools

import jax
import jax.numpy as jnp
from jax.experimental import pallas as pl
from jax.experimental.pallas import tpu as pltpu

# Class weights hard-coded in CriterionCrossEntropy (use_weight=True, 19 classes).
CLASS_WEIGHTS = (
    0.8194, 0.8946, 0.9416, 1.0091, 0.9925, 0.974, 1.0804, 1.0192, 0.8528,
    0.9771, 0.9139, 0.9744, 1.1098, 0.8883, 1.0639, 1.2476, 1.0729, 1.1323,
    1.0365,
)


def _interp_matrix(in_size, out_size):
    """(in_size, out_size) bilinear align_corners=True interpolation matrix."""
    if out_size == 1 or in_size == 1:
        src = jnp.zeros((out_size,), jnp.float32)
    else:
        src = jnp.arange(out_size, dtype=jnp.float32) * (
            (in_size - 1) / (out_size - 1))
    grid = jnp.arange(in_size, dtype=jnp.float32)[:, None]
    return jnp.maximum(0.0, 1.0 - jnp.abs(grid - src[None, :]))


# ---------------------------------------------------------------------------
# Fused kernel: width interpolation (MXU matmul) + per-pixel softmax-NLL +
# class weight -> one packed per-tile partial (num, den) block.
# ---------------------------------------------------------------------------
def _make_ce_kernel(use_weight, ignore_index):
    def kernel(xh_ref, mw_ref, labels_ref, cw_ref, out_ref):
        c, th, win = xh_ref.shape
        wout = mw_ref.shape[1]

        # Fused width interpolation: (C*TH, Win) @ (Win, Wout) on the MXU.
        x = xh_ref[...].astype(jnp.float32).reshape(c * th, win)
        up = jnp.dot(x, mw_ref[...], preferred_element_type=jnp.float32)
        up = up.reshape(c, th, wout)                           # (C, TH, Wout)

        lbl = labels_ref[...][None, :, :]                      # (1, TH, Wout)
        valid = lbl != ignore_index
        cls = jax.lax.broadcasted_iota(jnp.int32, (c, th, wout), 0)
        onehot = ((cls == lbl) & valid).astype(jnp.float32)    # 0 if ignored/padded

        # Class-axis reductions = elementwise slab ops over the leading dim.
        m = jnp.max(up, axis=0, keepdims=True)
        lse = m + jnp.log(jnp.sum(jnp.exp(up - m), axis=0, keepdims=True))
        tl = jnp.sum(up * onehot, axis=0, keepdims=True)       # true-class logit
        nll = lse - tl                                         # -log softmax[label]

        if use_weight:
            wgt = jnp.sum(cw_ref[...] * onehot, axis=0, keepdims=True)
        else:
            wgt = jnp.sum(onehot, axis=0, keepdims=True)       # 1 valid, 0 ignored

        num = jnp.sum(wgt * nll)                               # partial numerator
        den = jnp.sum(wgt)                                     # partial denominator

        # Single packed lane-dense (8, 128) block: row 0 = num, row 1 = den.
        rows = jax.lax.broadcasted_iota(jnp.int32, (8, 128), 0)
        out_ref[...] = jnp.where(rows == 0, num, jnp.where(rows == 1, den, 0.0))

    return kernel


# ---------------------------------------------------------------------------
# Forward: CriterionCrossEntropy(preds, target).  `preds` may be the list the
# PyTorch module receives (it uses preds[0]) or the logits array directly.
# ---------------------------------------------------------------------------
@functools.partial(
    jax.jit, static_argnames=("ignore_index", "use_weight", "tile_pixels"))
def criterion_cross_entropy(preds, target, *, ignore_index=255,
                            use_weight=False, tile_pixels=32768):
    pred_logits = preds[0] if isinstance(preds, (list, tuple)) else preds
    n, c, hin, win = pred_logits.shape
    hout, wout = target.shape[1], target.shape[2]

    # H tile: ~tile_pixels pixels per grid step, multiple of 8 sublanes.
    th = max(8, (int(tile_pixels) // max(wout, 1)) // 8 * 8)
    th = min(th, ((hout + 7) // 8) * 8)
    hout_pad = -(-hout // th) * th
    n_ht = hout_pad // th

    # Separable align_corners bilinear: up = Mh^T @ pred @ Mw.
    mh = _interp_matrix(hin, hout)                       # (Hin, Hout)
    if hout_pad != hout:                                 # zero-weight padded rows
        mh = jnp.pad(mh, ((0, 0), (0, hout_pad - hout)))
    mw = _interp_matrix(win, wout)                       # (Win, Wout)

    # Height interpolation on the low-width tensor (small; stays in XLA).
    # TODO(synk): fusing the H-interp matmul into the kernel too would need an
    # in-kernel cross-lane relayout; left in XLA at ~Win/Wout of full-res bytes.
    xh = jnp.einsum('yi,ncyx->ncix', mh,
                    pred_logits.astype(jnp.float32))     # (N, C, Hout_pad, Win)

    labels = target.astype(jnp.int32)
    if hout_pad != hout:
        labels = jnp.pad(labels, ((0, 0), (0, hout_pad - hout), (0, 0)),
                         constant_values=ignore_index)

    if use_weight:
        assert c == len(CLASS_WEIGHTS), "use_weight=True hard-codes 19 classes"
        cw = jnp.asarray(CLASS_WEIGHTS, jnp.float32).reshape(c, 1, 1)
    else:
        cw = jnp.ones((c, 1, 1), jnp.float32)            # unused in kernel

    kernel = _make_ce_kernel(use_weight, int(ignore_index))

    parts = pl.pallas_call(
        kernel,
        grid=(n, n_ht),
        in_specs=[
            pl.BlockSpec((None, c, th, win), lambda b, i: (b, 0, i, 0)),   # xh tile
            pl.BlockSpec((win, wout), lambda b, i: (0, 0)),                # Mw (resident)
            pl.BlockSpec((None, th, wout), lambda b, i: (b, i, 0)),        # labels tile
            pl.BlockSpec((c, 1, 1), lambda b, i: (0, 0, 0)),               # class weights
        ],
        out_specs=pl.BlockSpec((None, None, 8, 128), lambda b, i: (b, i, 0, 0)),
        out_shape=jax.ShapeDtypeStruct((n, n_ht, 8, 128), jnp.float32),
        compiler_params=pltpu.CompilerParams(
            dimension_semantics=("parallel", "parallel"),
            vmem_limit_bytes=48 * 1024 * 1024),
    )(xh, mw, labels, cw)

    # Tiny cross-tile reduction + final division stay in JAX.
    num = jnp.sum(parts[:, :, 0, 0])
    den = jnp.sum(parts[:, :, 1, 0])
    # den == 0 (every pixel ignored) yields NaN, matching PyTorch CrossEntropyLoss.
    return num / den


if __name__ == "__main__":
    key = jax.random.PRNGKey(0)
    N, C, Hin, Win = 2, 19, 8, 8      # 19 classes: matches the hard-coded weights
    Hout, Wout = 16, 16               # target spatial size (preds get upsampled)

    k1, k2, k3 = jax.random.split(key, 3)
    logits = jax.random.normal(k1, (N, C, Hin, Win), dtype=jnp.float32)
    preds = [logits]                  # the module's forward consumes preds[0]
    base_labels = jax.random.randint(k2, (N, Hout, Wout), 0, C)
    ignore_mask = jax.random.uniform(k3, (N, Hout, Wout)) < 0.1
    target = jnp.where(ignore_mask, 255, base_labels).astype(jnp.int32)

    loss_w = criterion_cross_entropy(preds, target, ignore_index=255,
                                     use_weight=True)
    loss_u = criterion_cross_entropy(preds, target, ignore_index=255,
                                     use_weight=False)
    jax.block_until_ready((loss_w, loss_u))
    print("KERNEL_OK")
</pallas_src>

<mosaic_0001>
module attributes {stable_mosaic.version = 11 : i64} {
  func.func @kernel(%arg0: i32, %arg1: i32, %arg2: memref<1x19x16x8xf32, #tpu.memory_space<vmem>>, %arg3: memref<8x16xf32, #tpu.memory_space<vmem>>, %arg4: memref<1x16x16xi32, #tpu.memory_space<vmem>>, %arg5: memref<19x1x1xf32, #tpu.memory_space<vmem>>, %arg6: memref<1x1x8x128xf32, #tpu.memory_space<vmem>>) attributes {dimension_semantics = [#tpu.dimension_semantics<parallel>, #tpu.dimension_semantics<parallel>], iteration_bounds = array<i64: 2, 1>, scalar_prefetch = 0 : i64, scratch_operands = 0 : i64, tpu.core_type = #tpu.core_type<tc>, window_params = [{transform_indices = @transform_0, window_bounds = array<i64: 1, 19, 16, 8>}, {pipeline_mode = #tpu.pipeline_mode<synchronous>, transform_indices = @transform_1, window_bounds = array<i64: 8, 16>}, {transform_indices = @transform_2, window_bounds = array<i64: 1, 16, 16>}, {pipeline_mode = #tpu.pipeline_mode<synchronous>, transform_indices = @transform_3, window_bounds = array<i64: 19, 1, 1>}, {transform_indices = @transform_4, window_bounds = array<i64: 1, 1, 8, 128>}]} {
    %c0 = arith.constant 0 : index
    %c0_0 = arith.constant 0 : index
    %c0_1 = arith.constant 0 : index
    %c0_2 = arith.constant 0 : index
    %0 = vector.load %arg2[%c0, %c0_0, %c0_1, %c0_2] : memref<1x19x16x8xf32, #tpu.memory_space<vmem>>, vector<1x19x16x8xf32>
    %1 = vector.shape_cast %0 : vector<1x19x16x8xf32> to vector<19x16x8xf32>
    %2 = vector.shape_cast %1 : vector<19x16x8xf32> to vector<304x8xf32>
    %c0_3 = arith.constant 0 : index
    %c0_4 = arith.constant 0 : index
    %3 = vector.load %arg3[%c0_3, %c0_4] : memref<8x16xf32, #tpu.memory_space<vmem>>, vector<8x16xf32>
    %cst = arith.constant dense<0.000000e+00> : vector<304x16xf32>
    %4 = tpu.matmul %2, %3, %cst {dimension_numbers = #tpu.dot_dimension_numbers<[1], [0], [0], [1], [0, 0, 1, 1], [], []>} : vector<304x8xf32>, vector<8x16xf32>, vector<304x16xf32> -> vector<304x16xf32>
    %5 = vector.shape_cast %4 : vector<304x16xf32> to vector<19x16x16xf32>
    %c0_5 = arith.constant 0 : index
    %c0_6 = arith.constant 0 : index
    %c0_7 = arith.constant 0 : index
    %6 = vector.load %arg4[%c0_5, %c0_6, %c0_7] : memref<1x16x16xi32, #tpu.memory_space<vmem>>, vector<1x16x16xi32>
    %7 = vector.shape_cast %6 : vector<1x16x16xi32> to vector<16x16xi32>
    %8 = vector.shape_cast %7 : vector<16x16xi32> to vector<1x16x16xi32>
    %c255_i32 = arith.constant 255 : i32
    %9 = vector.broadcast %c255_i32 : i32 to vector<1x16x16xi32>
    %10 = arith.cmpi ne, %8, %9 : vector<1x16x16xi32>
    %11 = tpu.iota {dimensions = array<i32: 0>} : vector<19x16x16xi32>
    %12 = vector.broadcast %8 : vector<1x16x16xi32> to vector<19x16x16xi32>
    %13 = arith.cmpi eq, %11, %12 : vector<19x16x16xi32>
    %14 = vector.broadcast %10 : vector<1x16x16xi1> to vector<19x16x16xi1>
    %15 = arith.andi %13, %14 : vector<19x16x16xi1>
    %16 = arith.extui %15 : vector<19x16x16xi1> to vector<19x16x16xi32>
    %17 = arith.sitofp %16 : vector<19x16x16xi32> to vector<19x16x16xf32>
    %cst_8 = arith.constant dense<0xFF800000> : vector<16x16xf32>
    %18 = vector.multi_reduction <maximumf>, %5, %cst_8 [0] : vector<19x16x16xf32> to vector<16x16xf32>
    %19 = vector.shape_cast %18 : vector<16x16xf32> to vector<1x16x16xf32>
    %20 = vector.broadcast %19 : vector<1x16x16xf32> to vector<19x16x16xf32>
    %21 = arith.subf %5, %20 : vector<19x16x16xf32>
    %22 = math.exp %21 : vector<19x16x16xf32>
    %cst_9 = arith.constant dense<0.000000e+00> : vector<16x16xf32>
    %23 = vector.multi_reduction <add>, %22, %cst_9 [0] : vector<19x16x16xf32> to vector<16x16xf32>
    %24 = vector.shape_cast %23 : vector<16x16xf32> to vector<1x16x16xf32>
    %25 = math.log %24 : vector<1x16x16xf32>
    %26 = arith.addf %19, %25 : vector<1x16x16xf32>
    %27 = arith.mulf %5, %17 : vector<19x16x16xf32>
    %cst_10 = arith.constant dense<0.000000e+00> : vector<16x16xf32>
    %28 = vector.multi_reduction <add>, %27, %cst_10 [0] : vector<19x16x16xf32> to vector<16x16xf32>
    %29 = vector.shape_cast %28 : vector<16x16xf32> to vector<1x16x16xf32>
    %30 = arith.subf %26, %29 : vector<1x16x16xf32>
    %c0_11 = arith.constant 0 : index
    %c0_12 = arith.constant 0 : index
    %c0_13 = arith.constant 0 : index
    %31 = vector.load %arg5[%c0_11, %c0_12, %c0_13] : memref<19x1x1xf32, #tpu.memory_space<vmem>>, vector<19x1x1xf32>
    %32 = vector.broadcast %31 : vector<19x1x1xf32> to vector<19x16x16xf32>
    %33 = arith.mulf %32, %17 : vector<19x16x16xf32>
    %cst_14 = arith.constant dense<0.000000e+00> : vector<16x16xf32>
    %34 = vector.multi_reduction <add>, %33, %cst_14 [0] : vector<19x16x16xf32> to vector<16x16xf32>
    %35 = vector.shape_cast %34 : vector<16x16xf32> to vector<1x16x16xf32>
    %36 = arith.mulf %35, %30 : vector<1x16x16xf32>
    %37 = vector.shape_cast %36 : vector<1x16x16xf32> to vector<1x1x16x16xf32>
    %cst_15 = arith.constant dense<0.000000e+00> : vector<1xf32>
    %38 = vector.multi_reduction <add>, %37, %cst_15 [1, 2, 3] : vector<1x1x16x16xf32> to vector<1xf32>
    %39 = vector.shape_cast %38 : vector<1xf32> to vector<1x1x1x1xf32>
    %40 = vector.extract %39[0, 0, 0, 0] : f32 from vector<1x1x1x1xf32>
    %41 = vector.shape_cast %35 : vector<1x16x16xf32> to vector<1x1x16x16xf32>
    %cst_16 = arith.constant dense<0.000000e+00> : vector<1xf32>
    %42 = vector.multi_reduction <add>, %41, %cst_16 [1, 2, 3] : vector<1x1x16x16xf32> to vector<1xf32>
    %43 = vector.shape_cast %42 : vector<1xf32> to vector<1x1x1x1xf32>
    %44 = vector.extract %43[0, 0, 0, 0] : f32 from vector<1x1x1x1xf32>
    %45 = tpu.iota {dimensions = array<i32: 0>} : vector<8x128xi32>
    %c0_i32 = arith.constant 0 : i32
    %46 = vector.broadcast %c0_i32 : i32 to vector<8x128xi32>
    %47 = arith.cmpi eq, %45, %46 : vector<8x128xi32>
    %c1_i32 = arith.constant 1 : i32
    %48 = vector.broadcast %c1_i32 : i32 to vector<8x128xi32>
    %49 = arith.cmpi eq, %45, %48 : vector<8x128xi32>
    %cst_17 = arith.constant 0.000000e+00 : f32
    %50 = vector.broadcast %44 : f32 to vector<8x128xf32>
    %51 = vector.broadcast %cst_17 : f32 to vector<8x128xf32>
    %52 = arith.select %49, %50, %51 : vector<8x128xi1>, vector<8x128xf32>
    %53 = vector.broadcast %40 : f32 to vector<8x128xf32>
    %54 = arith.select %47, %53, %52 : vector<8x128xi1>, vector<8x128xf32>
    %c0_18 = arith.constant 0 : index
    %c0_19 = arith.constant 0 : index
    %c0_20 = arith.constant 0 : index
    %c0_21 = arith.constant 0 : index
    %55 = vector.load %arg6[%c0_18, %c0_19, %c0_20, %c0_21] : memref<1x1x8x128xf32, #tpu.memory_space<vmem>>, vector<1x1x8x128xf32>
    %56 = vector.shape_cast %55 : vector<1x1x8x128xf32> to vector<8x128xf32>
    %57 = vector.shape_cast %54 : vector<8x128xf32> to vector<1x1x8x128xf32>
    tpu.vector_store %arg6[%c0_18, %c0_19, %c0_20, %c0_21], %57 {strides = array<i32>} : memref<1x1x8x128xf32, #tpu.memory_space<vmem>>, vector<1x1x8x128xf32>,
    return
  }
  func.func @transform_0(%arg0: i32, %arg1: i32) -> (i32, i32, i32, i32) {
    %c0_i32 = arith.constant 0 : i32
    %c0_i32_0 = arith.constant 0 : i32
    %c0_i32_1 = arith.constant 0 : i32
    return %arg0, %c0_i32, %arg1, %c0_i32_0 : i32, i32, i32, i32
  }
  func.func @transform_1(%arg0: i32, %arg1: i32) -> (i32, i32) {
    %c0_i32 = arith.constant 0 : i32
    %c0_i32_0 = arith.constant 0 : i32
    %c0_i32_1 = arith.constant 0 : i32
    return %c0_i32, %c0_i32_0 : i32, i32
  }
  func.func @transform_2(%arg0: i32, %arg1: i32) -> (i32, i32, i32) {
    %c0_i32 = arith.constant 0 : i32
    %c0_i32_0 = arith.constant 0 : i32
    return %arg0, %arg1, %c0_i32 : i32, i32, i32
  }
  func.func @transform_3(%arg0: i32, %arg1: i32) -> (i32, i32, i32) {
    %c0_i32 = arith.constant 0 : i32
    %c0_i32_0 = arith.constant 0 : i32
    %c0_i32_1 = arith.constant 0 : i32
    %c0_i32_2 = arith.constant 0 : i32
    return %c0_i32, %c0_i32_0, %c0_i32_1 : i32, i32, i32
  }
  func.func @transform_4(%arg0: i32, %arg1: i32) -> (i32, i32, i32, i32) {
    %c0_i32 = arith.constant 0 : i32
    %c0_i32_0 = arith.constant 0 : i32
    %c0_i32_1 = arith.constant 0 : i32
    return %arg0, %arg1, %c0_i32, %c0_i32_0 : i32, i32, i32, i32
  }
}

</mosaic_0001>

<llo_original>
// kernel: criterion_cross_entropy.1
$region0: #{criterion_cross_entropy.1}
  #allocation0 [shape = 'u32[]', space=smem, size = 0x4, offset = 0x4, fixed_abs, tag = 'smem constant byte address 0x4 - core index']
  #allocation1 [shape = 'u32[144,128]{1,0:T(1,128)}', space=vmem, size = 0x12000, scoped, tag = 'internal scratch']
  %s0 = inlined_call_operand.vmem [shape: f32[2,19,16,8], index: 0, kind: input, shape index: {}]
  %s1 = inlined_call_operand.vmem [shape: f32[8,16], index: 1, kind: input, shape index: {}]
  %s2 = inlined_call_operand.vmem [shape: s32[2,16,16], index: 2, kind: input, shape index: {}]
  %s3 = inlined_call_operand.vmem [shape: f32[19,1,1], index: 3, kind: input, shape index: {}]
  %s4 = inlined_call_operand.vmem [shape: f32[2,1,8,128], index: 4, kind: output, shape index: {}]
  %s5 = sld [smem:[#allocation0]]
  $region49: #{criterion_cross_entropy.1} parent=0
    _
  %s7 = ssub.s32 1, %s5
  %s8 = scalar_select 0, %s7, %s5
  loop: start=0, step=1, limit=4
  $region2: #{criterion_cross_entropy.1} parent=0 // loop_pre_header
    _
  $region3: #{criterion_cross_entropy.1} parent=0 // loop_header
    %s10 = sphi 0, %s14
    %p11 = scmp.ge.s32.totalorder %s10, 4
    %s17 = sphi 0, %s29
    %s18 = sphi 0, %s25
    %s19 = sphi 0, %s17
    %s20 = sphi 0, %s18
    %s21 = sphi 0, %s19
    %s22 = sphi 0, %s20
    %s34 = sphi 0, %s36
    %s37 = sphi 0, %s34
    %s38 = sphi 0, %s37
    %s54 = sphi 0, %s38
    %s58 = sphi 0, %s58
    %s60 = sphi 0, %s58
    %s61 = sphi 0, %s60
    %s75 = sphi 0, %s61
    %s83 = sphi 0, %s85
    %s86 = sphi 0, %s83
    %s87 = sphi 0, %s86
    %s103 = sphi 0, %s87
    %s107 = sphi 0, %s107
    %s109 = sphi 0, %s107
    %s110 = sphi 0, %s109
    %s124 = sphi 0, %s110
    %s132 = sphi 0, %s134
    %s135 = sphi 0, %s132
    %s136 = sphi 0, %s135
    %s152 = sphi 0, %s136
  $region4: #{criterion_cross_entropy.1} parent=0 // loop_header_branch
    %13 = sbr.rel (%p11) target = $region8
  $region5: #{criterion_cross_entropy.1} parent=0 // loop_body
    %s15 = ssub.s32 %s10, 1
    %s16 = ssub.s32 %s10, 2
    %s23 = sadd.s32 1, %s18
    %p24 = scmp.ge.s32.totalorder %s23, 1
    %s25 = scalar_select %p24, 0, %s23
    %s26 = sadd.s32 1, %s17
    %s27 = scalar_select %p24, %s26, %s17
    %p28 = scmp.ge.s32.totalorder %s27, 2
    %s29 = scalar_select %p28, 0, %s27
    %s30 = ssub.s32 %s17, %s29
    %s31 = ssub.s32 %s18, %s25
    %s32 = sor.u32 %s30, %s31
    %p33 = scmp.eq.s32.totalorder %s32, 0
    %s35 = sadd.s32 %s34, 1
    %s36 = scalar_select %p33, %s34, %s35
    %p39 = pneg %p33
    %p40 = scmp.eq.s32.totalorder %s10, 1
    %p41 = por %p39, %p40
    %p42 = scmp.ne.s32.totalorder %s34, %s37
    %p43 = scmp.eq.s32.totalorder %s10, 0
    %p44 = por %p42, %p43
    %p45 = scmp.ne.s32.totalorder %s34, %s37
    %p46 = scmp.eq.s32.totalorder %s15, 1
    %p47 = por %p45, %p46
    %p48 = scmp.ne.s32.totalorder %s37, %s38
    %p49 = scmp.eq.s32.totalorder %s15, 0
    %p50 = por %p48, %p49
    %p51 = scmp.ne.s32.totalorder %s37, %s38
    %p52 = scmp.eq.s32.totalorder %s16, 1
    %p53 = por %p51, %p52
    %p55 = scmp.ne.s32.totalorder %s38, %s54
    %p56 = scmp.eq.s32.totalorder %s16, 0
    %p57 = por %p55, %p56
    %s59 = sadd.s32 %s58, 1
    %p62 = scmp.eq.s32.totalorder %s10, 1
    %p63 = scmp.ne.s32.totalorder %s58, %s60
    %p64 = scmp.eq.s32.totalorder %s10, 0
    %p65 = por %p63, %p64
    %p66 = scmp.ne.s32.totalorder %s58, %s60
    %p67 = scmp.eq.s32.totalorder %s15, 1
    %p68 = por %p66, %p67
    %p69 = scmp.ne.s32.totalorder %s60, %s61
    %p70 = scmp.eq.s32.totalorder %s15, 0
    %p71 = por %p69, %p70
    %p72 = scmp.ne.s32.totalorder %s60, %s61
    %p73 = scmp.eq.s32.totalorder %s16, 1
    %p74 = por %p72, %p73
    %p76 = scmp.ne.s32.totalorder %s61, %s75
    %p77 = scmp.eq.s32.totalorder %s16, 0
    %p78 = por %p76, %p77
    %s79 = ssub.s32 %s17, %s29
    %s80 = ssub.s32 %s18, %s25
    %s81 = sor.u32 %s79, %s80
    %p82 = scmp.eq.s32.totalorder %s81, 0
    %s84 = sadd.s32 %s83, 1
    %s85 = scalar_select %p82, %s83, %s84
    %p88 = pneg %p82
    %p89 = scmp.eq.s32.totalorder %s10, 1
    %p90 = por %p88, %p89
    %p91 = scmp.ne.s32.totalorder %s83, %s86
    %p92 = scmp.eq.s32.totalorder %s10, 0
    %p93 = por %p91, %p92
    %p94 = scmp.ne.s32.totalorder %s83, %s86
    %p95 = scmp.eq.s32.totalorder %s15, 1
    %p96 = por %p94, %p95
    %p97 = scmp.ne.s32.totalorder %s86, %s87
    %p98 = scmp.eq.s32.totalorder %s15, 0
    %p99 = por %p97, %p98
    %p100 = scmp.ne.s32.totalorder %s86, %s87
    %p101 = scmp.eq.s32.totalorder %s16, 1
    %p102 = por %p100, %p101
    %p104 = scmp.ne.s32.totalorder %s87, %s103
    %p105 = scmp.eq.s32.totalorder %s16, 0
    %p106 = por %p104, %p105
    %s108 = sadd.s32 %s107, 1
    %p111 = scmp.eq.s32.totalorder %s10, 1
    %p112 = scmp.ne.s32.totalorder %s107, %s109
    %p113 = scmp.eq.s32.totalorder %s10, 0
    %p114 = por %p112, %p113
    %p115 = scmp.ne.s32.totalorder %s107, %s109
    %p116 = scmp.eq.s32.totalorder %s15, 1
    %p117 = por %p115, %p116
    %p118 = scmp.ne.s32.totalorder %s109, %s110
    %p119 = scmp.eq.s32.totalorder %s15, 0
    %p120 = por %p118, %p119
    %p121 = scmp.ne.s32.totalorder %s109, %s110
    %p122 = scmp.eq.s32.totalorder %s16, 1
    %p123 = por %p121, %p122
    %p125 = scmp.ne.s32.totalorder %s110, %s124
    %p126 = scmp.eq.s32.totalorder %s16, 0
    %p127 = por %p125, %p126
    %s128 = ssub.s32 %s17, %s29
    %s129 = ssub.s32 %s18, %s25
    %s130 = sor.u32 %s128, %s129
    %p131 = scmp.eq.s32.totalorder %s130, 0
    %s133 = sadd.s32 %s132, 1
    %s134 = scalar_select %p131, %s132, %s133
    %p137 = pneg %p131
    %p138 = scmp.eq.s32.totalorder %s10, 1
    %p139 = por %p137, %p138
    %p140 = scmp.ne.s32.totalorder %s132, %s135
    %p141 = scmp.eq.s32.totalorder %s10, 0
    %p142 = por %p140, %p141
    %p143 = scmp.ne.s32.totalorder %s132, %s135
    %p144 = scmp.eq.s32.totalorder %s15, 1
    %p145 = por %p143, %p144
    %p146 = scmp.ne.s32.totalorder %s135, %s136
    %p147 = scmp.eq.s32.totalorder %s15, 0
    %p148 = por %p146, %p147
    %p149 = scmp.ne.s32.totalorder %s135, %s136
    %p150 = scmp.eq.s32.totalorder %s16, 1
    %p151 = por %p149, %p150
    %p153 = scmp.ne.s32.totalorder %s136, %s152
    %p154 = scmp.eq.s32.totalorder %s16, 0
    %p155 = por %p153, %p154
    %p156 = scmp.le.s32.totalorder 1, %s10
    %p157 = scmp.lt.s32.totalorder %s10, 3
    %p158 = pnand %p156, %p157
    %p159 = pneg %p158
    // Predicated region
    $region9: #{criterion_cross_entropy.1} parent=5 // pred_check
      _
    $region10: #{criterion_cross_entropy.1} parent=5 // pred_check_branch
      %161 = sbr.rel (%p158) target = $region12
    $region11: #{criterion_cross_entropy.1} parent=5 // pred_region
      %s162 = ssub.s32 %s10, 1
      // Predicated region
      $region13: #{criterion_cross_entropy.1} parent=11 // pred_check
        %p163 = pneg %p71
      $region14: #{criterion_cross_entropy.1} parent=11 // pred_check_branch
        %165 = sbr.rel (%p163) target = $region16
      $region15: #{criterion_cross_entropy.1} parent=11 // pred_region
        _
      $region16: #{criterion_cross_entropy.1} parent=11 // pred_fallthru
        _
      // Predicated region
      $region17: #{criterion_cross_entropy.1} parent=11 // pred_check
        %p166 = pneg %p120
      $region18: #{criterion_cross_entropy.1} parent=11 // pred_check_branch
        %168 = sbr.rel (%p166) target = $region20
      $region19: #{criterion_cross_entropy.1} parent=11 // pred_region
        _
      $region20: #{criterion_cross_entropy.1} parent=11 // pred_fallthru
        _
    $region12: #{criterion_cross_entropy.1} parent=5 // pred_fallthru
      _
    %p169 = scmp.lt.s32.totalorder %s10, 2
    // Predicated region
    $region21: #{criterion_cross_entropy.1} parent=5 // pred_check
      %p170 = pneg %p169
    $region22: #{criterion_cross_entropy.1} parent=5 // pred_check_branch
      %172 = sbr.rel (%p170) target = $region24
    $region23: #{criterion_cross_entropy.1} parent=5 // pred_region
      // Predicated region
      $region25: #{criterion_cross_entropy.1} parent=23 // pred_check
        %p173 = pneg %p44
      $region26: #{criterion_cross_entropy.1} parent=23 // pred_check_branch
        %175 = sbr.rel (%p173) target = $region28
      $region27: #{criterion_cross_entropy.1} parent=23 // pred_region
        %s176 = smul.u32 2, %s18
        %p177 = scmp.lt.s32.totalorder %s17, 1
        %s178 = scalar_select %p177, %s17, 1
        %p179 = scmp.lt.s32.totalorder %s176, 1
        %s180 = scalar_select %p179, %s176, 1
        %s181 = smul.addr %s178, 38
        %s182 = sadd.s32 %s180, %s181
        %s183 = smul.addr %s182, 8
        %s184 = scalar_lea.vmem %s0, %s183
        %s185 = smul.u32 2, %s18
      $region28: #{criterion_cross_entropy.1} parent=23 // pred_fallthru
        _
      // Predicated region
      $region29: #{criterion_cross_entropy.1} parent=23 // pred_check
        %p186 = pneg %p93
      $region30: #{criterion_cross_entropy.1} parent=23 // pred_check_branch
        %188 = sbr.rel (%p186) target = $region32
      $region31: #{criterion_cross_entropy.1} parent=23 // pred_region
        %s189 = smul.u32 2, %s18
        %p190 = scmp.lt.s32.totalorder %s17, 1
        %s191 = scalar_select %p190, %s17, 1
        %p192 = scmp.lt.s32.totalorder %s189, 1
        %s193 = scalar_select %p192, %s189, 1
        %s194 = smul.addr %s191, 2
        %s195 = sadd.s32 %s193, %s194
        %s196 = smul.addr %s195, 8
        %s197 = scalar_lea.vmem %s2, %s196
        %s198 = smul.u32 2, %s18
      $region32: #{criterion_cross_entropy.1} parent=23 // pred_fallthru
        _
    $region24: #{criterion_cross_entropy.1} parent=5 // pred_fallthru
      _
    %p199 = scmp.le.s32.totalorder 1, %s10
    %p200 = scmp.lt.s32.totalorder %s10, 3
    %p201 = pnand %p199, %p200
    %p202 = pneg %p201
    // Predicated region
    $region33: #{criterion_cross_entropy.1} parent=5 // pred_check
      _
    $region34: #{criterion_cross_entropy.1} parent=5 // pred_check_branch
      %204 = sbr.rel (%p201) target = $region36
    $region35: #{criterion_cross_entropy.1} parent=5 // pred_region
      %s205 = ssub.s32 %s10, 1
      %s206 = smul.u32 2, %s20
      %p207 = scmp.lt.s32.totalorder %s19, 1
      %s208 = scalar_select %p207, %s19, 1
      %p209 = scmp.lt.s32.totalorder %s206, 1
      %s210 = scalar_select %p209, %s206, 1
      %s211 = smul.addr %s208, 38
      %s212 = sadd.s32 %s210, %s211
      %s213 = smul.addr %s212, 8
      %s214 = scalar_lea.vmem %s0, %s213
      %p215 = pneg %p50
      %p216 = pneg %p47
      %p217 = pneg %p71
      %p218 = pneg %p68
      %s219 = smul.u32 2, %s20
      %p220 = scmp.lt.s32.totalorder %s19, 1
      %s221 = scalar_select %p220, %s19, 1
      %p222 = scmp.lt.s32.totalorder %s219, 1
      %s223 = scalar_select %p222, %s219, 1
      %s224 = smul.addr %s221, 2
      %s225 = sadd.s32 %s223, %s224
      %s226 = smul.addr %s225, 8
      %s227 = scalar_lea.vmem %s2, %s226
      %p228 = pneg %p99
      %p229 = pneg %p96
      %p230 = pneg %p120
      %p231 = pneg %p117
      %p232 = pneg %p148
      %p233 = pneg %p145
      %p234 = scmp.lt.s32.totalorder %s19, 1
      %s235 = scalar_select %p234, %s19, 1
      %p236 = scmp.lt.s32.totalorder %s20, 0
      %s237 = scalar_select %p236, %s20, 0
      %s238 = sadd.s32 %s237, %s235
      %s239 = smul.addr %s238, 8
      %s240 = scalar_lea.vmem %s4, %s239
      %s241 = smul.u32 2, %s20
      %p242 = scmp.lt.s32.totalorder %s19, 1
      %s243 = scalar_select %p242, %s19, 1
      %p244 = scmp.lt.s32.totalorder %s241, 1
      %s245 = scalar_select %p244, %s241, 1
      %s246 = smul.addr %s243, 38
      %s247 = sadd.s32 %s245, %s246
      %s248 = smul.addr %s247, 8
      %s249 = scalar_lea.vmem %s0, %s248
      %s250 = smul.u32 2, %s20
      %s251 = smul.u32 2, %s20
      %p252 = scmp.lt.s32.totalorder %s19, 1
      %s253 = scalar_select %p252, %s19, 1
      %p254 = scmp.lt.s32.totalorder %s251, 1
      %s255 = scalar_select %p254, %s251, 1
      %s256 = smul.addr %s253, 2
      %s257 = sadd.s32 %s255, %s256
      %s258 = smul.addr %s257, 8
      %s259 = scalar_lea.vmem %s2, %s258
      %s260 = smul.u32 2, %s20
      %p261 = scmp.lt.s32.totalorder %s19, 1
      %s262 = scalar_select %p261, %s19, 1
      %p263 = scmp.lt.s32.totalorder %s20, 0
      %s264 = scalar_select %p263, %s20, 0
      %s265 = sadd.s32 %s264, %s262
      %s266 = smul.addr %s265, 8
      %s267 = scalar_lea.vmem %s4, %s266
      %v268 = vld [vmem:[%s249] sm:$0xff]
      %v269 = vld [vmem:[%s249 + $0x8] sm:$0xff]
      %v270 = vld [vmem:[%s249 + $0x10] sm:$0xff]
      %v271 = vld [vmem:[%s249 + $0x18] sm:$0xff]
      %v272 = vld [vmem:[%s249 + $0x20] sm:$0xff]
      %v273 = vld [vmem:[%s249 + $0x28] sm:$0xff]
      %v274 = vld [vmem:[%s249 + $0x30] sm:$0xff]
      %v275 = vld [vmem:[%s249 + $0x38] sm:$0xff]
      %v276 = vld [vmem:[%s249 + $0x40] sm:$0xff]
      %v277 = vld [vmem:[%s249 + $0x48] sm:$0xff]
      %v278 = vld [vmem:[%s249 + $0x50] sm:$0xff]
      %v279 = vld [vmem:[%s249 + $0x58] sm:$0xff]
      %v280 = vld [vmem:[%s249 + $0x60] sm:$0xff]
      %v281 = vld [vmem:[%s249 + $0x68] sm:$0xff]
      %v282 = vld [vmem:[%s249 + $0x70] sm:$0xff]
      %v283 = vld [vmem:[%s249 + $0x78] sm:$0xff]
      %v284 = vld [vmem:[%s249 + $0x80] sm:$0xff]
      %v285 = vld [vmem:[%s249 + $0x88] sm:$0xff]
      %v286 = vld [vmem:[%s249 + $0x90] sm:$0xff]
      %v287 = vld [vmem:[%s249 + $0x98] sm:$0xff]
      %v288 = vld [vmem:[%s249 + $0xa0] sm:$0xff]
      %v289 = vld [vmem:[%s249 + $0xa8] sm:$0xff]
      %v290 = vld [vmem:[%s249 + $0xb0] sm:$0xff]
      %v291 = vld [vmem:[%s249 + $0xb8] sm:$0xff]
      %v292 = vld [vmem:[%s249 + $0xc0] sm:$0xff]
      %v293 = vld [vmem:[%s249 + $0xc8] sm:$0xff]
      %v294 = vld [vmem:[%s249 + $0xd0] sm:$0xff]
      %v295 = vld [vmem:[%s249 + $0xd8] sm:$0xff]
      %v296 = vld [vmem:[%s249 + $0xe0] sm:$0xff]
      %v297 = vld [vmem:[%s249 + $0xe8] sm:$0xff]
      %v298 = vld [vmem:[%s249 + $0xf0] sm:$0xff]
      %v299 = vld [vmem:[%s249 + $0xf8] sm:$0xff]
      %v300 = vld [vmem:[%s249 + $0x100] sm:$0xff]
      %v301 = vld [vmem:[%s249 + $0x108] sm:$0xff]
      %v302 = vld [vmem:[%s249 + $0x110] sm:$0xff]
      %v303 = vld [vmem:[%s249 + $0x118] sm:$0xff]
      %v304 = vld [vmem:[%s249 + $0x120] sm:$0xff]
      %v305 = vld [vmem:[%s249 + $0x128] sm:$0xff]
      %v306 = vld [vmem:[%s1] sm:$0xff]
      %vm307 = vcmask 64512
      %v309 = vsel %vm307, %v268, 0
      %v312 = vsel %vm307, %v269, 0
      %v315 = vsel %vm307, %v270, 0
      %v318 = vsel %vm307, %v271, 0
      %v321 = vsel %vm307, %v272, 0
      %v324 = vsel %vm307, %v273, 0
      %v327 = vsel %vm307, %v274, 0
      %v330 = vsel %vm307, %v275, 0
      %v333 = vsel %vm307, %v276, 0
      %v336 = vsel %vm307, %v277, 0
      %v339 = vsel %vm307, %v278, 0
      %v342 = vsel %vm307, %v279, 0
      %v345 = vsel %vm307, %v280, 0
      %v348 = vsel %vm307, %v281, 0
      %v351 = vsel %vm307, %v282, 0
      %v354 = vsel %vm307, %v283, 0
      %v357 = vsel %vm307, %v284, 0
      %v360 = vsel %vm307, %v285, 0
      %v363 = vsel %vm307, %v286, 0
      %v366 = vsel %vm307, %v287, 0
      %v369 = vsel %vm307, %v288, 0
      %v372 = vsel %vm307, %v289, 0
      %v375 = vsel %vm307, %v290, 0
      %v378 = vsel %vm307, %v291, 0
      %v381 = vsel %vm307, %v292, 0
      %v384 = vsel %vm307, %v293, 0
      %v387 = vsel %vm307, %v294, 0
      %v390 = vsel %vm307, %v295, 0
      %v393 = vsel %vm307, %v296, 0
      %v396 = vsel %vm307, %v297, 0
      %v399 = vsel %vm307, %v298, 0
      %v402 = vsel %vm307, %v299, 0
      %v405 = vsel %vm307, %v300, 0
      %v408 = vsel %vm307, %v301, 0
      %v411 = vsel %vm307, %v302, 0
      %v414 = vsel %vm307, %v303, 0
      %v417 = vsel %vm307, %v304, 0
      %v420 = vsel %vm307, %v305, 0
      %422 = vmatprep.subr.mxu0 0.0
      %423 = vmatpush1.msra.mxu0 %v306
      %424 = vmatprep.subr.mxu0 0.0
      %425 = vmatpush1.msra.mxu0 0.0
      %426 = vmatprep.subr.mxu0 0.0
      %427 = vmatpush1.msra.mxu0 0.0
      %428 = vmatprep.subr.mxu0 0.0
      %429 = vmatpush1.msra.mxu0 0.0
      %430 = vmatprep.subr.mxu0 0.0
      %431 = vmatpush1.msra.mxu0 0.0
      %432 = vmatprep.subr.mxu0 0.0
      %433 = vmatpush1.msra.mxu0 0.0
      %434 = vmatprep.subr.mxu0 0.0
      %435 = vmatpush1.msra.mxu0 0.0
      %436 = vmatprep.subr.mxu0 0.0
      %437 = vmatpush1.msra.mxu0 0.0
      %438 = vmatprep.subr.mxu0 0.0
      %439 = vmatpush1.msra.mxu0 0.0
      %440 = vmatprep.subr.mxu0 0.0
      %441 = vmatpush1.msra.mxu0 0.0
      %442 = vmatprep.subr.mxu0 0.0
      %443 = vmatpush1.msra.mxu0 0.0
      %444 = vmatprep.subr.mxu0 0.0
      %445 = vmatpush1.msra.mxu0 0.0
      %446 = vmatprep.subr.mxu0 0.0
      %447 = vmatpush1.msra.mxu0 0.0
      %448 = vmatprep.subr.mxu0 0.0
      %449 = vmatpush1.msra.mxu0 0.0
      %450 = vmatprep.subr.mxu0 0.0
      %451 = vmatpush1.msra.mxu0 0.0
      %452 = vmatprep.subr.mxu0 0.0
      %453 = vmatpush1.msra.mxu0 0.0
      %454 = vmatprep.subr.mxu0 0.0
      %455 = vmatpush1.msra.mxu0 0.0
      %456 = vmatprep.subr.mxu0 0.0
      %457 = vmatpush1.msra.mxu0 0.0
      %458 = vmatprep.subr.mxu0 0.0
      %459 = vmatpush1.msra.mxu0 0.0
      %460 = vmatprep.subr.mxu0 0.0
      %461 = vmatpush1.msra.mxu0 0.0
      %462 = vmatprep.subr.mxu0 0.0
      %463 = vmatpush1.msra.mxu0 0.0
      %464 = vmatprep.subr.mxu0 0.0
      %465 = vmatpush1.msra.mxu0 0.0
      %466 = vmatprep.subr.mxu0 0.0
      %467 = vmatpush1.msra.mxu0 0.0
      %468 = vmatprep.subr.mxu0 0.0
      %469 = vmatpush1.msra.mxu0 0.0
      %470 = vmatprep.subr.mxu0 0.0
      %471 = vmatpush1.msra.mxu0 0.0
      %472 = vmatprep.subr.mxu0 0.0
      %473 = vmatpush1.msra.mxu0 0.0
      %474 = vmatprep.subr.mxu0 0.0
      %475 = vmatpush1.msra.mxu0 0.0
      %476 = vmatprep.subr.mxu0 0.0
      %477 = vmatpush1.msra.mxu0 0.0
      %478 = vmatprep.subr.mxu0 0.0
      %479 = vmatpush1.msra.mxu0 0.0
      %480 = vmatprep.subr.mxu0 0.0
      %481 = vmatpush1.msra.mxu0 0.0
      %482 = vmatprep.subr.mxu0 0.0
      %483 = vmatpush1.msra.mxu0 0.0
      %484 = vmatprep.subr.mxu0 0.0
      %485 = vmatpush1.msra.mxu0 0.0
      %486 = vmatprep.mubr.f32.mxu0 0.0
      %487 = vmatmul.mubr.f32.gmra.mrb[0].mxu0 %v309
      %v488 = vpop.f32.mrb[0].mxu0
      %v489 = vadd.f32 0.0, %v488
      %v490 = vpop.f32.mrb[0].mxu0
      %491 = vmatprep.mubr.f32.mxu0 0.0
      %492 = vmatmul.mubr.f32.gmra.mrb[0].mxu0 %v312
      %v493 = vpop.f32.mrb[0].mxu0
      %v494 = vadd.f32 0.0, %v493
      %v495 = vpop.f32.mrb[0].mxu0
      %496 = vmatprep.mubr.f32.mxu0 0.0
      %497 = vmatmul.mubr.f32.gmra.mrb[0].mxu0 %v315
      %v498 = vpop.f32.mrb[0].mxu0
      %v499 = vadd.f32 0.0, %v498
      %v500 = vpop.f32.mrb[0].mxu0
      %501 = vmatprep.mubr.f32.mxu0 0.0
      %502 = vmatmul.mubr.f32.gmra.mrb[0].mxu0 %v318
      %v503 = vpop.f32.mrb[0].mxu0
      %v504 = vadd.f32 0.0, %v503
      %v505 = vpop.f32.mrb[0].mxu0
      %506 = vmatprep.mubr.f32.mxu0 0.0
      %507 = vmatmul.mubr.f32.gmra.mrb[0].mxu0 %v321
      %v508 = vpop.f32.mrb[0].mxu0
      %v509 = vadd.f32 0.0, %v508
      %v510 = vpop.f32.mrb[0].mxu0
      %511 = vmatprep.mubr.f32.mxu0 0.0
      %512 = vmatmul.mubr.f32.gmra.mrb[0].mxu0 %v324
      %v513 = vpop.f32.mrb[0].mxu0
      %v514 = vadd.f32 0.0, %v513
      %v515 = vpop.f32.mrb[0].mxu0
      %516 = vmatprep.mubr.f32.mxu0 0.0
      %517 = vmatmul.mubr.f32.gmra.mrb[0].mxu0 %v327
      %v518 = vpop.f32.mrb[0].mxu0
      %v519 = vadd.f32 0.0, %v518
      %v520 = vpop.f32.mrb[0].mxu0
      %521 = vmatprep.mubr.f32.mxu0 0.0
      %522 = vmatmul.mubr.f32.gmra.mrb[0].mxu0 %v330
      %v523 = vpop.f32.mrb[0].mxu0
      %v524 = vadd.f32 0.0, %v523
      %v525 = vpop.f32.mrb[0].mxu0
      %526 = vmatprep.mubr.f32.mxu0 0.0
      %527 = vmatmul.mubr.f32.gmra.mrb[0].mxu0 %v333
      %v528 = vpop.f32.mrb[0].mxu0
      %v529 = vadd.f32 0.0, %v528
      %v530 = vpop.f32.mrb[0].mxu0
      %531 = vmatprep.mubr.f32.mxu0 0.0
      %532 = vmatmul.mubr.f32.gmra.mrb[0].mxu0 %v336
      %v533 = vpop.f32.mrb[0].mxu0
      %v534 = vadd.f32 0.0, %v533
      %v535 = vpop.f32.mrb[0].mxu0
      %536 = vmatprep.mubr.f32.mxu0 0.0
      %537 = vmatmul.mubr.f32.gmra.mrb[0].mxu0 %v339
      %v538 = vpop.f32.mrb[0].mxu0
      %v539 = vadd.f32 0.0, %v538
      %v540 = vpop.f32.mrb[0].mxu0
      %541 = vmatprep.mubr.f32.mxu0 0.0
      %542 = vmatmul.mubr.f32.gmra.mrb[0].mxu0 %v342
      %v543 = vpop.f32.mrb[0].mxu0
      %v544 = vadd.f32 0.0, %v543
      %v545 = vpop.f32.mrb[0].mxu0
      %546 = vmatprep.mubr.f32.mxu0 0.0
      %547 = vmatmul.mubr.f32.gmra.mrb[0].mxu0 %v345
      %v548 = vpop.f32.mrb[0].mxu0
      %v549 = vadd.f32 0.0, %v548
      %v550 = vpop.f32.mrb[0].mxu0
      %551 = vmatprep.mubr.f32.mxu0 0.0
      %552 = vmatmul.mubr.f32.gmra.mrb[0].mxu0 %v348
      %v553 = vpop.f32.mrb[0].mxu0
      %v554 = vadd.f32 0.0, %v553
      %v555 = vpop.f32.mrb[0].mxu0
      %556 = vmatprep.mubr.f32.mxu0 0.0
      %557 = vmatmul.mubr.f32.gmra.mrb[0].mxu0 %v351
      %v558 = vpop.f32.mrb[0].mxu0
      %v559 = vadd.f32 0.0, %v558
      %v560 = vpop.f32.mrb[0].mxu0
      %561 = vmatprep.mubr.f32.mxu0 0.0
      %562 = vmatmul.mubr.f32.gmra.mrb[0].mxu0 %v354
      %v563 = vpop.f32.mrb[0].mxu0
      %v564 = vadd.f32 0.0, %v563
      %v565 = vpop.f32.mrb[0].mxu0
      %566 = vmatprep.mubr.f32.mxu0 0.0
      %567 = vmatmul.mubr.f32.gmra.mrb[0].mxu0 %v357
      %v568 = vpop.f32.mrb[0].mxu0
      %v569 = vadd.f32 0.0, %v568
      %v570 = vpop.f32.mrb[0].mxu0
      %571 = vmatprep.mubr.f32.mxu0 0.0
      %572 = vmatmul.mubr.f32.gmra.mrb[0].mxu0 %v360
      %v573 = vpop.f32.mrb[0].mxu0
      %v574 = vadd.f32 0.0, %v573
      %v575 = vpop.f32.mrb[0].mxu0
      %576 = vmatprep.mubr.f32.mxu0 0.0
      %577 = vmatmul.mubr.f32.gmra.mrb[0].mxu0 %v363
      %v578 = vpop.f32.mrb[0].mxu0
      %v579 = vadd.f32 0.0, %v578
      %v580 = vpop.f32.mrb[0].mxu0
      %581 = vmatprep.mubr.f32.mxu0 0.0
      %582 = vmatmul.mubr.f32.gmra.mrb[0].mxu0 %v366
      %v583 = vpop.f32.mrb[0].mxu0
      %v584 = vadd.f32 0.0, %v583
      %v585 = vpop.f32.mrb[0].mxu0
      %586 = vmatprep.mubr.f32.mxu0 0.0
      %587 = vmatmul.mubr.f32.gmra.mrb[0].mxu0 %v369
      %v588 = vpop.f32.mrb[0].mxu0
      %v589 = vadd.f32 0.0, %v588
      %v590 = vpop.f32.mrb[0].mxu0
      %591 = vmatprep.mubr.f32.mxu0 0.0
      %592 = vmatmul.mubr.f32.gmra.mrb[0].mxu0 %v372
      %v593 = vpop.f32.mrb[0].mxu0
      %v594 = vadd.f32 0.0, %v593
      %v595 = vpop.f32.mrb[0].mxu0
      %596 = vmatprep.mubr.f32.mxu0 0.0
      %597 = vmatmul.mubr.f32.gmra.mrb[0].mxu0 %v375
      %v598 = vpop.f32.mrb[0].mxu0
      %v599 = vadd.f32 0.0, %v598
      %v600 = vpop.f32.mrb[0].mxu0
      %601 = vmatprep.mubr.f32.mxu0 0.0
      %602 = vmatmul.mubr.f32.gmra.mrb[0].mxu0 %v378
      %v603 = vpop.f32.mrb[0].mxu0
      %v604 = vadd.f32 0.0, %v603
      %v605 = vpop.f32.mrb[0].mxu0
      %606 = vmatprep.mubr.f32.mxu0 0.0
      %607 = vmatmul.mubr.f32.gmra.mrb[0].mxu0 %v381
      %v608 = vpop.f32.mrb[0].mxu0
      %v609 = vadd.f32 0.0, %v608
      %v610 = vpop.f32.mrb[0].mxu0
      %611 = vmatprep.mubr.f32.mxu0 0.0
      %612 = vmatmul.mubr.f32.gmra.mrb[0].mxu0 %v384
      %v613 = vpop.f32.mrb[0].mxu0
      %v614 = vadd.f32 0.0, %v613
      %v615 = vpop.f32.mrb[0].mxu0
      %616 = vmatprep.mubr.f32.mxu0 0.0
      %617 = vmatmul.mubr.f32.gmra.mrb[0].mxu0 %v387
      %v618 = vpop.f32.mrb[0].mxu0
      %v619 = vadd.f32 0.0, %v618
      %v620 = vpop.f32.mrb[0].mxu0
      %621 = vmatprep.mubr.f32.mxu0 0.0
      %622 = vmatmul.mubr.f32.gmra.mrb[0].mxu0 %v390
      %v623 = vpop.f32.mrb[0].mxu0
      %v624 = vadd.f32 0.0, %v623
      %v625 = vpop.f32.mrb[0].mxu0
      %626 = vmatprep.mubr.f32.mxu0 0.0
      %627 = vmatmul.mubr.f32.gmra.mrb[0].mxu0 %v393
      %v628 = vpop.f32.mrb[0].mxu0
      %v629 = vadd.f32 0.0, %v628
      %v630 = vpop.f32.mrb[0].mxu0
      %631 = vmatprep.mubr.f32.mxu0 0.0
      %632 = vmatmul.mubr.f32.gmra.mrb[0].mxu0 %v396
      %v633 = vpop.f32.mrb[0].mxu0
      %v634 = vadd.f32 0.0, %v633
      %v635 = vpop.f32.mrb[0].mxu0
      %636 = vmatprep.mubr.f32.mxu0 0.0
      %637 = vmatmul.mubr.f32.gmra.mrb[0].mxu0 %v399
      %v638 = vpop.f32.mrb[0].mxu0
      %v639 = vadd.f32 0.0, %v638
      %v640 = vpop.f32.mrb[0].mxu0
      %641 = vmatprep.mubr.f32.mxu0 0.0
      %642 = vmatmul.mubr.f32.gmra.mrb[0].mxu0 %v402
      %v643 = vpop.f32.mrb[0].mxu0
      %v644 = vadd.f32 0.0, %v643
      %v645 = vpop.f32.mrb[0].mxu0
      %646 = vmatprep.mubr.f32.mxu0 0.0
      %647 = vmatmul.mubr.f32.gmra.mrb[0].mxu0 %v405
      %v648 = vpop.f32.mrb[0].mxu0
      %v649 = vadd.f32 0.0, %v648
      %v650 = vpop.f32.mrb[0].mxu0
      %651 = vmatprep.mubr.f32.mxu0 0.0
      %652 = vmatmul.mubr.f32.gmra.mrb[0].mxu0 %v408
      %v653 = vpop.f32.mrb[0].mxu0
      %v654 = vadd.f32 0.0, %v653
      %v655 = vpop.f32.mrb[0].mxu0
      %656 = vmatprep.mubr.f32.mxu0 0.0
      %657 = vmatmul.mubr.f32.gmra.mrb[0].mxu0 %v411
      %v658 = vpop.f32.mrb[0].mxu0
      %v659 = vadd.f32 0.0, %v658
      %v660 = vpop.f32.mrb[0].mxu0
      %661 = vmatprep.mubr.f32.mxu0 0.0
      %662 = vmatmul.mubr.f32.gmra.mrb[0].mxu0 %v414
      %v663 = vpop.f32.mrb[0].mxu0
      %v664 = vadd.f32 0.0, %v663
      %v665 = vpop.f32.mrb[0].mxu0
      %666 = vmatprep.mubr.f32.mxu0 0.0
      %667 = vmatmul.mubr.f32.gmra.mrb[0].mxu0 %v417
      %v668 = vpop.f32.mrb[0].mxu0
      %v669 = vadd.f32 0.0, %v668
      %v670 = vpop.f32.mrb[0].mxu0
      %671 = vmatprep.mubr.f32.mxu0 0.0
      %672 = vmatmul.mubr.f32.gmra.mrb[0].mxu0 %v420
      %v673 = vpop.f32.mrb[0].mxu0
      %v674 = vadd.f32 0.0, %v673
      %v675 = vpop.f32.mrb[0].mxu0
      %676 = vdwg.mxu0
      %v677 = vld [vmem:[%s259] sm:$0xff]
      %v678 = vld [vmem:[%s259 + $0x8] sm:$0xff]
      %vm679 = vcmp.ne.s32.totalorder %v677, 255
      %vm680 = vcmp.ne.s32.totalorder %v678, 255
      %vm681 = vcmp.eq.s32.totalorder %v677, 0
      %vm682 = vcmp.eq.s32.totalorder %v678, 0
      %vm683 = vcmp.eq.s32.totalorder %v677, 1
      %vm684 = vcmp.eq.s32.totalorder %v678, 1
      %vm685 = vcmp.eq.s32.totalorder %v677, 2
      %vm686 = vcmp.eq.s32.totalorder %v678, 2
      %vm687 = vcmp.eq.s32.totalorder %v677, 3
      %vm688 = vcmp.eq.s32.totalorder %v678, 3
      %vm689 = vcmp.eq.s32.totalorder %v677, 4
      %vm690 = vcmp.eq.s32.totalorder %v678, 4
      %vm691 = vcmp.eq.s32.totalorder %v677, 5
      %vm692 = vcmp.eq.s32.totalorder %v678, 5
      %vm693 = vcmp.eq.s32.totalorder %v677, 6
      %vm694 = vcmp.eq.s32.totalorder %v678, 6
      %vm695 = vcmp.eq.s32.totalorder %v677, 7
      %vm696 = vcmp.eq.s32.totalorder %v678, 7
      %vm697 = vcmp.eq.s32.totalorder %v677, 8
      %vm698 = vcmp.eq.s32.totalorder %v678, 8
      %vm699 = vcmp.eq.s32.totalorder %v677, 9
      %vm700 = vcmp.eq.s32.totalorder %v678, 9
      %vm701 = vcmp.eq.s32.totalorder %v677, 10
      %vm702 = vcmp.eq.s32.totalorder %v678, 10
      %vm703 = vcmp.eq.s32.totalorder %v677, 11
      %vm704 = vcmp.eq.s32.totalorder %v678, 11
      %vm705 = vcmp.eq.s32.totalorder %v677, 12
      %vm706 = vcmp.eq.s32.totalorder %v678, 12
      %vm707 = vcmp.eq.s32.totalorder %v677, 13
      %vm708 = vcmp.eq.s32.totalorder %v678, 13
      %vm709 = vcmp.eq.s32.totalorder %v677, 14
      %vm710 = vcmp.eq.s32.totalorder %v678, 14
      %vm711 = vcmp.eq.s32.totalorder %v677, 15
      %vm712 = vcmp.eq.s32.totalorder %v678, 15
      %vm713 = vcmp.eq.s32.totalorder %v677, 16
      %vm714 = vcmp.eq.s32.totalorder %v678, 16
      %vm715 = vcmp.eq.s32.totalorder %v677, 17
      %vm716 = vcmp.eq.s32.totalorder %v678, 17
      %vm717 = vcmp.eq.s32.totalorder %v677, 18
      %vm718 = vcmp.eq.s32.totalorder %v678, 18
      %v719 = vsel %vm679, 1, 0
      %v720 = vsel %vm680, 1, 0
      %vm721 = vcmp.eq.s32.totalorder %v719, 1
      %vm722 = vcmp.eq.s32.totalorder %v720, 1
      %vm723 = vmand %vm681, %vm721
      %vm724 = vmand %vm682, %vm722
      %vm725 = vmand %vm683, %vm721
      %vm726 = vmand %vm684, %vm722
      %vm727 = vmand %vm685, %vm721
      %vm728 = vmand %vm686, %vm722
      %vm729 = vmand %vm687, %vm721
      %vm730 = vmand %vm688, %vm722
      %vm731 = vmand %vm689, %vm721
      %vm732 = vmand %vm690, %vm722
      %vm733 = vmand %vm691, %vm721
      %vm734 = vmand %vm692, %vm722
      %vm735 = vmand %vm693, %vm721
      %vm736 = vmand %vm694, %vm722
      %vm737 = vmand %vm695, %vm721
      %vm738 = vmand %vm696, %vm722
      %vm739 = vmand %vm697, %vm721
      %vm740 = vmand %vm698, %vm722
      %vm741 = vmand %vm699, %vm721
      %vm742 = vmand %vm700, %vm722
      %vm743 = vmand %vm701, %vm721
      %vm744 = vmand %vm702, %vm722
      %vm745 = vmand %vm703, %vm721
      %vm746 = vmand %vm704, %vm722
      %vm747 = vmand %vm705, %vm721
      %vm748 = vmand %vm706, %vm722
      %vm749 = vmand %vm707, %vm721
      %vm750 = vmand %vm708, %vm722
      %vm751 = vmand %vm709, %vm721
      %vm752 = vmand %vm710, %vm722
      %vm753 = vmand %vm711, %vm721
      %vm754 = vmand %vm712, %vm722
      %vm755 = vmand %vm713, %vm721
      %vm756 = vmand %vm714, %vm722
      %vm757 = vmand %vm715, %vm721
      %vm758 = vmand %vm716, %vm722
      %vm759 = vmand %vm717, %vm721
      %vm760 = vmand %vm718, %vm722
      %v761 = vsel %vm723, 1, 0
      %v762 = vsel %vm724, 1, 0
      %v763 = vsel %vm725, 1, 0
      %v764 = vsel %vm726, 1, 0
      %v765 = vsel %vm727, 1, 0
      %v766 = vsel %vm728, 1, 0
      %v767 = vsel %vm729, 1, 0
      %v768 = vsel %vm730, 1, 0
      %v769 = vsel %vm731, 1, 0
      %v770 = vsel %vm732, 1, 0
      %v771 = vsel %vm733, 1, 0
      %v772 = vsel %vm734, 1, 0
      %v773 = vsel %vm735, 1, 0
      %v774 = vsel %vm736, 1, 0
      %v775 = vsel %vm737, 1, 0
      %v776 = vsel %vm738, 1, 0
      %v777 = vsel %vm739, 1, 0
      %v778 = vsel %vm740, 1, 0
      %v779 = vsel %vm741, 1, 0
      %v780 = vsel %vm742, 1, 0
      %v781 = vsel %vm743, 1, 0
      %v782 = vsel %vm744, 1, 0
      %v783 = vsel %vm745, 1, 0
      %v784 = vsel %vm746, 1, 0
      %v785 = vsel %vm747, 1, 0
      %v786 = vsel %vm748, 1, 0
      %v787 = vsel %vm749, 1, 0
      %v788 = vsel %vm750, 1, 0
      %v789 = vsel %vm751, 1, 0
      %v790 = vsel %vm752, 1, 0
      %v791 = vsel %vm753, 1, 0
      %v792 = vsel %vm754, 1, 0
      %v793 = vsel %vm755, 1, 0
      %v794 = vsel %vm756, 1, 0
      %v795 = vsel %vm757, 1, 0
      %v796 = vsel %vm758, 1, 0
      %v797 = vsel %vm759, 1, 0
      %v798 = vsel %vm760, 1, 0
      %v799 = vcvt.s32.f32 %v761
      %v800 = vcvt.s32.f32 %v762
      %v801 = vcvt.s32.f32 %v763
      %v802 = vcvt.s32.f32 %v764
      %v803 = vcvt.s32.f32 %v765
      %v804 = vcvt.s32.f32 %v766
      %v805 = vcvt.s32.f32 %v767
      %v806 = vcvt.s32.f32 %v768
      %v807 = vcvt.s32.f32 %v769
      %v808 = vcvt.s32.f32 %v770
      %v809 = vcvt.s32.f32 %v771
      %v810 = vcvt.s32.f32 %v772
      %v811 = vcvt.s32.f32 %v773
      %v812 = vcvt.s32.f32 %v774
      %v813 = vcvt.s32.f32 %v775
      %v814 = vcvt.s32.f32 %v776
      %v815 = vcvt.s32.f32 %v777
      %v816 = vcvt.s32.f32 %v778
      %v817 = vcvt.s32.f32 %v779
      %v818 = vcvt.s32.f32 %v780
      %v819 = vcvt.s32.f32 %v781
      %v820 = vcvt.s32.f32 %v782
      %v821 = vcvt.s32.f32 %v783
      %v822 = vcvt.s32.f32 %v784
      %v823 = vcvt.s32.f32 %v785
      %v824 = vcvt.s32.f32 %v786
      %v825 = vcvt.s32.f32 %v787
      %v826 = vcvt.s32.f32 %v788
      %v827 = vcvt.s32.f32 %v789
      %v828 = vcvt.s32.f32 %v790
      %v829 = vcvt.s32.f32 %v791
      %v830 = vcvt.s32.f32 %v792
      %v831 = vcvt.s32.f32 %v793
      %v832 = vcvt.s32.f32 %v794
      %v833 = vcvt.s32.f32 %v795
      %v834 = vcvt.s32.f32 %v796
      %v835 = vcvt.s32.f32 %v797
      %v836 = vcvt.s32.f32 %v798
      %vm837 = vcmask 130048
      %v838 = vsel %vm837, %v489, -inf
      %v839 = vsel %vm837, %v499, -inf
      %v840 = vsel %vm837, %v509, -inf
      %v841 = vmax.f32 %v838, %v840
      %v842 = vsel %vm837, %v519, -inf
      %v843 = vmax.f32 %v839, %v842
      %v844 = vsel %vm837, %v529, -inf
      %v845 = vmax.f32 %v841, %v844
      %v846 = vsel %vm837, %v539, -inf
      %v847 = vmax.f32 %v843, %v846
      %v848 = vsel %vm837, %v549, -inf
      %v849 = vmax.f32 %v845, %v848
      %v850 = vsel %vm837, %v559, -inf
      %v851 = vmax.f32 %v847, %v850
      %v852 = vsel %vm837, %v569, -inf
      %v853 = vmax.f32 %v849, %v852
      %v854 = vsel %vm837, %v579, -inf
      %v855 = vmax.f32 %v851, %v854
      %v856 = vsel %vm837, %v589, -inf
      %v857 = vmax.f32 %v853, %v856
      %v858 = vsel %vm837, %v599, -inf
      %v859 = vmax.f32 %v855, %v858
      %v860 = vsel %vm837, %v609, -inf
      %v861 = vmax.f32 %v857, %v860
      %v862 = vsel %vm837, %v619, -inf
      %v863 = vmax.f32 %v859, %v862
      %v864 = vsel %vm837, %v629, -inf
      %v865 = vmax.f32 %v861, %v864
      %v866 = vsel %vm837, %v639, -inf
      %v867 = vmax.f32 %v863, %v866
      %v868 = vsel %vm837, %v649, -inf
      %v869 = vmax.f32 %v865, %v868
      %v870 = vsel %vm837, %v659, -inf
      %v871 = vmax.f32 %v867, %v870
      %v872 = vsel %vm837, %v669, -inf
      %v873 = vmax.f32 %v869, %v872
      %v874 = vmax.f32 %v873, %v871
      %v875 = vsel %vm837, %v494, -inf
      %v876 = vsel %vm837, %v504, -inf
      %v877 = vsel %vm837, %v514, -inf
      %v878 = vmax.f32 %v875, %v877
      %v879 = vsel %vm837, %v524, -inf
      %v880 = vmax.f32 %v876, %v879
      %v881 = vsel %vm837, %v534, -inf
      %v882 = vmax.f32 %v878, %v881
      %v883 = vsel %vm837, %v544, -inf
      %v884 = vmax.f32 %v880, %v883
      %v885 = vsel %vm837, %v554, -inf
      %v886 = vmax.f32 %v882, %v885
      %v887 = vsel %vm837, %v564, -inf
      %v888 = vmax.f32 %v884, %v887
      %v889 = vsel %vm837, %v574, -inf
      %v890 = vmax.f32 %v886, %v889
      %v891 = vsel %vm837, %v584, -inf
      %v892 = vmax.f32 %v888, %v891
      %v893 = vsel %vm837, %v594, -inf
      %v894 = vmax.f32 %v890, %v893
      %v895 = vsel %vm837, %v604, -inf
      %v896 = vmax.f32 %v892, %v895
      %v897 = vsel %vm837, %v614, -inf
      %v898 = vmax.f32 %v894, %v897
      %v899 = vsel %vm837, %v624, -inf
      %v900 = vmax.f32 %v896, %v899
      %v901 = vsel %vm837, %v634, -inf
      %v902 = vmax.f32 %v898, %v901
      %v903 = vsel %vm837, %v644, -inf
      %v904 = vmax.f32 %v900, %v903
      %v905 = vsel %vm837, %v654, -inf
      %v906 = vmax.f32 %v902, %v905
      %v907 = vsel %vm837, %v664, -inf
      %v908 = vmax.f32 %v904, %v907
      %v909 = vsel %vm837, %v674, -inf
      %v910 = vmax.f32 %v906, %v909
      %v911 = vmax.f32 %v910, %v908
      %v912 = vsub.f32 %v489, %v874
      %v913 = vsub.f32 %v494, %v911
      %v914 = vsub.f32 %v499, %v874
      %v915 = vsub.f32 %v504, %v911
      %v916 = vsub.f32 %v509, %v874
      %v917 = vsub.f32 %v514, %v911
      %v918 = vsub.f32 %v519, %v874
      %v919 = vsub.f32 %v524, %v911
      %v920 = vsub.f32 %v529, %v874
      %v921 = vsub.f32 %v534, %v911
      %v922 = vsub.f32 %v539, %v874
      %v923 = vsub.f32 %v544, %v911
      %v924 = vsub.f32 %v549, %v874
      %v925 = vsub.f32 %v554, %v911
      %v926 = vsub.f32 %v559, %v874
      %v927 = vsub.f32 %v564, %v911
      %v928 = vsub.f32 %v569, %v874
      %v929 = vsub.f32 %v574, %v911
      %v930 = vsub.f32 %v579, %v874
      %v931 = vsub.f32 %v584, %v911
      %v932 = vsub.f32 %v589, %v874
      %v933 = vsub.f32 %v594, %v911
      %v934 = vsub.f32 %v599, %v874
      %v935 = vsub.f32 %v604, %v911
      %v936 = vsub.f32 %v609, %v874
      %v937 = vsub.f32 %v614, %v911
      %v938 = vsub.f32 %v619, %v874
      %v939 = vsub.f32 %v624, %v911
      %v940 = vsub.f32 %v629, %v874
      %v941 = vsub.f32 %v634, %v911
      %v942 = vsub.f32 %v639, %v874
      %v943 = vsub.f32 %v644, %v911
      %v944 = vsub.f32 %v649, %v874
      %v945 = vsub.f32 %v654, %v911
      %v946 = vsub.f32 %v659, %v874
      %v947 = vsub.f32 %v664, %v911
      %v948 = vsub.f32 %v669, %v874
      %v949 = vsub.f32 %v674, %v911
      %v950 = vmul.f32 %v912, 1.442695
      %v951 = vpow.pop %v950
      %v952 = vmul.f32 %v913, 1.442695
      %v953 = vpow.pop %v952
      %v954 = vmul.f32 %v914, 1.442695
      %v955 = vpow.pop %v954
      %v956 = vmul.f32 %v915, 1.442695
      %v957 = vpow.pop %v956
      %v958 = vmul.f32 %v916, 1.442695
      %v959 = vpow.pop %v958
      %v960 = vmul.f32 %v917, 1.442695
      %v961 = vpow.pop %v960
      %v962 = vmul.f32 %v918, 1.442695
      %v963 = vpow.pop %v962
      %v964 = vmul.f32 %v919, 1.442695
      %v965 = vpow.pop %v964
      %v966 = vmul.f32 %v920, 1.442695
      %v967 = vpow.pop %v966
      %v968 = vmul.f32 %v921, 1.442695
      %v969 = vpow.pop %v968
      %v970 = vmul.f32 %v922, 1.442695
      %v971 = vpow.pop %v970
      %v972 = vmul.f32 %v923, 1.442695
      %v973 = vpow.pop %v972
      %v974 = vmul.f32 %v924, 1.442695
      %v975 = vpow.pop %v974
      %v976 = vmul.f32 %v925, 1.442695
      %v977 = vpow.pop %v976
      %v978 = vmul.f32 %v926, 1.442695
      %v979 = vpow.pop %v978
      %v980 = vmul.f32 %v927, 1.442695
      %v981 = vpow.pop %v980
      %v982 = vmul.f32 %v928, 1.442695
      %v983 = vpow.pop %v982
      %v984 = vmul.f32 %v929, 1.442695
      %v985 = vpow.pop %v984
      %v986 = vmul.f32 %v930, 1.442695
      %v987 = vpow.pop %v986
      %v988 = vmul.f32 %v931, 1.442695
      %v989 = vpow.pop %v988
      %v990 = vmul.f32 %v932, 1.442695
      %v991 = vpow.pop %v990
      %v992 = vmul.f32 %v933, 1.442695
      %v993 = vpow.pop %v992
      %v994 = vmul.f32 %v934, 1.442695
      %v995 = vpow.pop %v994
      %v996 = vmul.f32 %v935, 1.442695
      %v997 = vpow.pop %v996
      %v998 = vmul.f32 %v936, 1.442695
      %v999 = vpow.pop %v998
      %v1000 = vmul.f32 %v937, 1.442695
      %v1001 = vpow.pop %v1000
      %v1002 = vmul.f32 %v938, 1.442695
      %v1003 = vpow.pop %v1002
      %v1004 = vmul.f32 %v939, 1.442695
      %v1005 = vpow.pop %v1004
      %v1006 = vmul.f32 %v940, 1.442695
      %v1007 = vpow.pop %v1006
      %v1008 = vmul.f32 %v941, 1.442695
      %v1009 = vpow.pop %v1008
      %v1010 = vmul.f32 %v942, 1.442695
      %v1011 = vpow.pop %v1010
      %v1012 = vmul.f32 %v943, 1.442695
      %v1013 = vpow.pop %v1012
      %v1014 = vmul.f32 %v944, 1.442695
      %v1015 = vpow.pop %v1014
      %v1016 = vmul.f32 %v945, 1.442695
      %v1017 = vpow.pop %v1016
      %v1018 = vmul.f32 %v946, 1.442695
      %v1019 = vpow.pop %v1018
      %v1020 = vmul.f32 %v947, 1.442695
      %v1021 = vpow.pop %v1020
      %v1022 = vmul.f32 %v948, 1.442695
      %v1023 = vpow.pop %v1022
      %v1024 = vmul.f32 %v949, 1.442695
      %v1025 = vpow.pop %v1024
      %v1026 = vsel %vm837, %v951, 0.0
      %v1027 = vsel %vm837, %v955, 0.0
      %v1028 = vadd.f32 %v1026, %v1027
      %v1029 = vsel %vm837, %v959, 0.0
      %v1030 = vadd.f32 %v1028, %v1029
      %v1031 = vsel %vm837, %v963, 0.0
      %v1032 = vadd.f32 %v1030, %v1031
      %v1033 = vsel %vm837, %v967, 0.0
      %v1034 = vadd.f32 %v1032, %v1033
      %v1035 = vsel %vm837, %v971, 0.0
      %v1036 = vadd.f32 %v1034, %v1035
      %v1037 = vsel %vm837, %v975, 0.0
      %v1038 = vadd.f32 %v1036, %v1037
      %v1039 = vsel %vm837, %v979, 0.0
      %v1040 = vadd.f32 %v1038, %v1039
      %v1041 = vsel %vm837, %v983, 0.0
      %v1042 = vadd.f32 %v1040, %v1041
      %v1043 = vsel %vm837, %v987, 0.0
      %v1044 = vadd.f32 %v1042, %v1043
      %v1045 = vsel %vm837, %v991, 0.0
      %v1046 = vadd.f32 %v1044, %v1045
      %v1047 = vsel %vm837, %v995, 0.0
      %v1048 = vadd.f32 %v1046, %v1047
      %v1049 = vsel %vm837, %v999, 0.0
      %v1050 = vadd.f32 %v1048, %v1049
      %v1051 = vsel %vm837, %v1003, 0.0
      %v1052 = vadd.f32 %v1050, %v1051
      %v1053 = vsel %vm837, %v1007, 0.0
      %v1054 = vadd.f32 %v1052, %v1053
      %v1055 = vsel %vm837, %v1011, 0.0
      %v1056 = vadd.f32 %v1054, %v1055
      %v1057 = vsel %vm837, %v1015, 0.0
      %v1058 = vadd.f32 %v1056, %v1057
      %v1059 = vsel %vm837, %v1019, 0.0
      %v1060 = vadd.f32 %v1058, %v1059
      %v1061 = vsel %vm837, %v1023, 0.0
      %v1062 = vadd.f32 %v1060, %v1061
      %v1063 = vsel %vm837, %v953, 0.0
      %v1064 = vsel %vm837, %v957, 0.0
      %v1065 = vadd.f32 %v1063, %v1064
      %v1066 = vsel %vm837, %v961, 0.0
      %v1067 = vadd.f32 %v1065, %v1066
      %v1068 = vsel %vm837, %v965, 0.0
      %v1069 = vadd.f32 %v1067, %v1068
      %v1070 = vsel %vm837, %v969, 0.0
      %v1071 = vadd.f32 %v1069, %v1070
      %v1072 = vsel %vm837, %v973, 0.0
      %v1073 = vadd.f32 %v1071, %v1072
      %v1074 = vsel %vm837, %v977, 0.0
      %v1075 = vadd.f32 %v1073, %v1074
      %v1076 = vsel %vm837, %v981, 0.0
      %v1077 = vadd.f32 %v1075, %v1076
      %v1078 = vsel %vm837, %v985, 0.0
      %v1079 = vadd.f32 %v1077, %v1078
      %v1080 = vsel %vm837, %v989, 0.0
      %v1081 = vadd.f32 %v1079, %v1080
      %v1082 = vsel %vm837, %v993, 0.0
      %v1083 = vadd.f32 %v1081, %v1082
      %v1084 = vsel %vm837, %v997, 0.0
      %v1085 = vadd.f32 %v1083, %v1084
      %v1086 = vsel %vm837, %v1001, 0.0
      %v1087 = vadd.f32 %v1085, %v1086
      %v1088 = vsel %vm837, %v1005, 0.0
      %v1089 = vadd.f32 %v1087, %v1088
      %v1090 = vsel %vm837, %v1009, 0.0
      %v1091 = vadd.f32 %v1089, %v1090
      %v1092 = vsel %vm837, %v1013, 0.0
      %v1093 = vadd.f32 %v1091, %v1092
      %v1094 = vsel %vm837, %v1017, 0.0
      %v1095 = vadd.f32 %v1093, %v1094
      %v1096 = vsel %vm837, %v1021, 0.0
      %v1097 = vadd.f32 %v1095, %v1096
      %v1098 = vsel %vm837, %v1025, 0.0
      %v1099 = vadd.f32 %v1097, %v1098
      %v1100 = vlog2.pop %v1062
      %v1101 = vmul.f32 %v1100, 0.6931472
      %v1102 = vlog2.pop %v1099
      %v1103 = vmul.f32 %v1102, 0.6931472
      %v1104 = vadd.f32 %v874, %v1101
      %v1105 = vadd.f32 %v911, %v1103
      %v1106 = vmul.f32 %v489, %v799
      %v1107 = vmul.f32 %v494, %v800
      %v1108 = vmul.f32 %v499, %v801
      %v1109 = vmul.f32 %v504, %v802
      %v1110 = vmul.f32 %v509, %v803
      %v1111 = vmul.f32 %v514, %v804
      %v1112 = vmul.f32 %v519, %v805
      %v1113 = vmul.f32 %v524, %v806
      %v1114 = vmul.f32 %v529, %v807
      %v1115 = vmul.f32 %v534, %v808
      %v1116 = vmul.f32 %v539, %v809
      %v1117 = vmul.f32 %v544, %v810
      %v1118 = vmul.f32 %v549, %v811
      %v1119 = vmul.f32 %v554, %v812
      %v1120 = vmul.f32 %v559, %v813
      %v1121 = vmul.f32 %v564, %v814
      %v1122 = vmul.f32 %v569, %v815
      %v1123 = vmul.f32 %v574, %v816
      %v1124 = vmul.f32 %v579, %v817
      %v1125 = vmul.f32 %v584, %v818
      %v1126 = vmul.f32 %v589, %v819
      %v1127 = vmul.f32 %v594, %v820
      %v1128 = vmul.f32 %v599, %v821
      %v1129 = vmul.f32 %v604, %v822
      %v1130 = vmul.f32 %v609, %v823
      %v1131 = vmul.f32 %v614, %v824
      %v1132 = vmul.f32 %v619, %v825
      %v1133 = vmul.f32 %v624, %v826
      %v1134 = vmul.f32 %v629, %v827
      %v1135 = vmul.f32 %v634, %v828
      %v1136 = vmul.f32 %v639, %v829
      %v1137 = vmul.f32 %v644, %v830
      %v1138 = vmul.f32 %v649, %v831
      %v1139 = vmul.f32 %v654, %v832
      %v1140 = vmul.f32 %v659, %v833
      %v1141 = vmul.f32 %v664, %v834
      %v1142 = vmul.f32 %v669, %v835
      %v1143 = vmul.f32 %v674, %v836
      %v1144 = vsel %vm837, %v1106, 0.0
      %v1145 = vsel %vm837, %v1108, 0.0
      %v1146 = vadd.f32 %v1144, %v1145
      %v1147 = vsel %vm837, %v1110, 0.0
      %v1148 = vadd.f32 %v1146, %v1147
      %v1149 = vsel %vm837, %v1112, 0.0
      %v1150 = vadd.f32 %v1148, %v1149
      %v1151 = vsel %vm837, %v1114, 0.0
      %v1152 = vadd.f32 %v1150, %v1151
      %v1153 = vsel %vm837, %v1116, 0.0
      %v1154 = vadd.f32 %v1152, %v1153
      %v1155 = vsel %vm837, %v1118, 0.0
      %v1156 = vadd.f32 %v1154, %v1155
      %v1157 = vsel %vm837, %v1120, 0.0
      %v1158 = vadd.f32 %v1156, %v1157
      %v1159 = vsel %vm837, %v1122, 0.0
      %v1160 = vadd.f32 %v1158, %v1159
      %v1161 = vsel %vm837, %v1124, 0.0
      %v1162 = vadd.f32 %v1160, %v1161
      %v1163 = vsel %vm837, %v1126, 0.0
      %v1164 = vadd.f32 %v1162, %v1163
      %v1165 = vsel %vm837, %v1128, 0.0
      %v1166 = vadd.f32 %v1164, %v1165
      %v1167 = vsel %vm837, %v1130, 0.0
      %v1168 = vadd.f32 %v1166, %v1167
      %v1169 = vsel %vm837, %v1132, 0.0
      %v1170 = vadd.f32 %v1168, %v1169
      %v1171 = vsel %vm837, %v1134, 0.0
      %v1172 = vadd.f32 %v1170, %v1171
      %v1173 = vsel %vm837, %v1136, 0.0
      %v1174 = vadd.f32 %v1172, %v1173
      %v1175 = vsel %vm837, %v1138, 0.0
      %v1176 = vadd.f32 %v1174, %v1175
      %v1177 = vsel %vm837, %v1140, 0.0
      %v1178 = vadd.f32 %v1176, %v1177
      %v1179 = vsel %vm837, %v1142, 0.0
      %v1180 = vadd.f32 %v1178, %v1179
      %v1181 = vsel %vm837, %v1107, 0.0
      %v1182 = vsel %vm837, %v1109, 0.0
      %v1183 = vadd.f32 %v1181, %v1182
      %v1184 = vsel %vm837, %v1111, 0.0
      %v1185 = vadd.f32 %v1183, %v1184
      %v1186 = vsel %vm837, %v1113, 0.0
      %v1187 = vadd.f32 %v1185, %v1186
      %v1188 = vsel %vm837, %v1115, 0.0
      %v1189 = vadd.f32 %v1187, %v1188
      %v1190 = vsel %vm837, %v1117, 0.0
      %v1191 = vadd.f32 %v1189, %v1190
      %v1192 = vsel %vm837, %v1119, 0.0
      %v1193 = vadd.f32 %v1191, %v1192
      %v1194 = vsel %vm837, %v1121, 0.0
      %v1195 = vadd.f32 %v1193, %v1194
      %v1196 = vsel %vm837, %v1123, 0.0
      %v1197 = vadd.f32 %v1195, %v1196
      %v1198 = vsel %vm837, %v1125, 0.0
      %v1199 = vadd.f32 %v1197, %v1198
      %v1200 = vsel %vm837, %v1127, 0.0
      %v1201 = vadd.f32 %v1199, %v1200
      %v1202 = vsel %vm837, %v1129, 0.0
      %v1203 = vadd.f32 %v1201, %v1202
      %v1204 = vsel %vm837, %v1131, 0.0
      %v1205 = vadd.f32 %v1203, %v1204
      %v1206 = vsel %vm837, %v1133, 0.0
      %v1207 = vadd.f32 %v1205, %v1206
      %v1208 = vsel %vm837, %v1135, 0.0
      %v1209 = vadd.f32 %v1207, %v1208
      %v1210 = vsel %vm837, %v1137, 0.0
      %v1211 = vadd.f32 %v1209, %v1210
      %v1212 = vsel %vm837, %v1139, 0.0
      %v1213 = vadd.f32 %v1211, %v1212
      %v1214 = vsel %vm837, %v1141, 0.0
      %v1215 = vadd.f32 %v1213, %v1214
      %v1216 = vsel %vm837, %v1143, 0.0
      %v1217 = vadd.f32 %v1215, %v1216
      %v1218 = vsub.f32 %v1104, %v1180
      %v1219 = vsub.f32 %v1105, %v1217
      %v1220 = vld [vmem:[%s3] sm:$0x1]
      %v1221 = vld [vmem:[%s3 + $0x1] sm:$0x1]
      %v1222 = vld [vmem:[%s3 + $0x2] sm:$0x1]
      %v1223 = vld [vmem:[%s3 + $0x3] sm:$0x1]
      %v1224 = vld [vmem:[%s3 + $0x4] sm:$0x1]
      %v1225 = vld [vmem:[%s3 + $0x5] sm:$0x1]
      %v1226 = vld [vmem:[%s3 + $0x6] sm:$0x1]
      %v1227 = vld [vmem:[%s3 + $0x7] sm:$0x1]
      %v1228 = vld [vmem:[%s3 + $0x8] sm:$0x1]
      %v1229 = vld [vmem:[%s3 + $0x9] sm:$0x1]
      %v1230 = vld [vmem:[%s3 + $0xa] sm:$0x1]
      %v1231 = vld [vmem:[%s3 + $0xb] sm:$0x1]
      %v1232 = vld [vmem:[%s3 + $0xc] sm:$0x1]
      %v1233 = vld [vmem:[%s3 + $0xd] sm:$0x1]
      %v1234 = vld [vmem:[%s3 + $0xe] sm:$0x1]
      %v1235 = vld [vmem:[%s3 + $0xf] sm:$0x1]
      %v1236 = vld [vmem:[%s3 + $0x10] sm:$0x1]
      %v1237 = vld [vmem:[%s3 + $0x11] sm:$0x1]
      %v1238 = vld [vmem:[%s3 + $0x12] sm:$0x1]
      %v1258 = vlaneseq
      %v1259 = vshrl.u32 %v1258, 7
      %v1260 = vsub.s32 0, %v1259
      %v1261 = vrot.slane %v1220, %v1260
      %v1262 = vlaneseq
      %v1263 = vshrl.u32 %v1262, 7
      %v1264 = vsub.s32 0, %v1263
      %v1265 = vrot.slane %v1221, %v1264
      %v1266 = vlaneseq
      %v1267 = vshrl.u32 %v1266, 7
      %v1268 = vsub.s32 0, %v1267
      %v1269 = vrot.slane %v1222, %v1268
      %v1270 = vlaneseq
      %v1271 = vshrl.u32 %v1270, 7
      %v1272 = vsub.s32 0, %v1271
      %v1273 = vrot.slane %v1223, %v1272
      %v1274 = vlaneseq
      %v1275 = vshrl.u32 %v1274, 7
      %v1276 = vsub.s32 0, %v1275
      %v1277 = vrot.slane %v1224, %v1276
      %v1278 = vlaneseq
      %v1279 = vshrl.u32 %v1278, 7
      %v1280 = vsub.s32 0, %v1279
      %v1281 = vrot.slane %v1225, %v1280
      %v1282 = vlaneseq
      %v1283 = vshrl.u32 %v1282, 7
      %v1284 = vsub.s32 0, %v1283
      %v1285 = vrot.slane %v1226, %v1284
      %v1286 = vlaneseq
      %v1287 = vshrl.u32 %v1286, 7
      %v1288 = vsub.s32 0, %v1287
      %v1289 = vrot.slane %v1227, %v1288
      %v1290 = vlaneseq
      %v1291 = vshrl.u32 %v1290, 7
      %v1292 = vsub.s32 0, %v1291
      %v1293 = vrot.slane %v1228, %v1292
      %v1294 = vlaneseq
      %v1295 = vshrl.u32 %v1294, 7
      %v1296 = vsub.s32 0, %v1295
      %v1297 = vrot.slane %v1229, %v1296
      %v1298 = vlaneseq
      %v1299 = vshrl.u32 %v1298, 7
      %v1300 = vsub.s32 0, %v1299
      %v1301 = vrot.slane %v1230, %v1300
      %v1302 = vlaneseq
      %v1303 = vshrl.u32 %v1302, 7
      %v1304 = vsub.s32 0, %v1303
      %v1305 = vrot.slane %v1231, %v1304
      %v1306 = vlaneseq
      %v1307 = vshrl.u32 %v1306, 7
      %v1308 = vsub.s32 0, %v1307
      %v1309 = vrot.slane %v1232, %v1308
      %v1310 = vlaneseq
      %v1311 = vshrl.u32 %v1310, 7
      %v1312 = vsub.s32 0, %v1311
      %v1313 = vrot.slane %v1233, %v1312
      %v1314 = vlaneseq
      %v1315 = vshrl.u32 %v1314, 7
      %v1316 = vsub.s32 0, %v1315
      %v1317 = vrot.slane %v1234, %v1316
      %v1318 = vlaneseq
      %v1319 = vshrl.u32 %v1318, 7
      %v1320 = vsub.s32 0, %v1319
      %v1321 = vrot.slane %v1235, %v1320
      %v1322 = vlaneseq
      %v1323 = vshrl.u32 %v1322, 7
      %v1324 = vsub.s32 0, %v1323
      %v1325 = vrot.slane %v1236, %v1324
      %v1326 = vlaneseq
      %v1327 = vshrl.u32 %v1326, 7
      %v1328 = vsub.s32 0, %v1327
      %v1329 = vrot.slane %v1237, %v1328
      %v1330 = vlaneseq
      %v1331 = vshrl.u32 %v1330, 7
      %v1332 = vsub.s32 0, %v1331
      %v1333 = vrot.slane %v1238, %v1332
      %1334 = vset.pattern.permute.xlu0 0
      %1335 = vperm.xlu0 %1334, %v1261
      %v1336 = vpop.permute.xlu0 %1335
      %1338 = vset.pattern.permute.xlu0 0
      %1339 = vperm.xlu0 %1338, %v1265
      %v1340 = vpop.permute.xlu0 %1339
      %1342 = vset.pattern.permute.xlu0 0
      %1343 = vperm.xlu0 %1342, %v1269
      %v1344 = vpop.permute.xlu0 %1343
      %1346 = vset.pattern.permute.xlu0 0
      %1347 = vperm.xlu0 %1346, %v1273
      %v1348 = vpop.permute.xlu0 %1347
      %1350 = vset.pattern.permute.xlu0 0
      %1351 = vperm.xlu0 %1350, %v1277
      %v1352 = vpop.permute.xlu0 %1351
      %1354 = vset.pattern.permute.xlu0 0
      %1355 = vperm.xlu0 %1354, %v1281
      %v1356 = vpop.permute.xlu0 %1355
      %1358 = vset.pattern.permute.xlu0 0
      %1359 = vperm.xlu0 %1358, %v1285
      %v1360 = vpop.permute.xlu0 %1359
      %1362 = vset.pattern.permute.xlu0 0
      %1363 = vperm.xlu0 %1362, %v1289
      %v1364 = vpop.permute.xlu0 %1363
      %1366 = vset.pattern.permute.xlu0 0
      %1367 = vperm.xlu0 %1366, %v1293
      %v1368 = vpop.permute.xlu0 %1367
      %1370 = vset.pattern.permute.xlu0 0
      %1371 = vperm.xlu0 %1370, %v1297
      %v1372 = vpop.permute.xlu0 %1371
      %1374 = vset.pattern.permute.xlu0 0
      %1375 = vperm.xlu0 %1374, %v1301
      %v1376 = vpop.permute.xlu0 %1375
      %1378 = vset.pattern.permute.xlu0 0
      %1379 = vperm.xlu0 %1378, %v1305
      %v1380 = vpop.permute.xlu0 %1379
      %1382 = vset.pattern.permute.xlu0 0
      %1383 = vperm.xlu0 %1382, %v1309
      %v1384 = vpop.permute.xlu0 %1383
      %1386 = vset.pattern.permute.xlu0 0
      %1387 = vperm.xlu0 %1386, %v1313
      %v1388 = vpop.permute.xlu0 %1387
      %1390 = vset.pattern.permute.xlu0 0
      %1391 = vperm.xlu0 %1390, %v1317
      %v1392 = vpop.permute.xlu0 %1391
      %1394 = vset.pattern.permute.xlu0 0
      %1395 = vperm.xlu0 %1394, %v1321
      %v1396 = vpop.permute.xlu0 %1395
      %1398 = vset.pattern.permute.xlu0 0
      %1399 = vperm.xlu0 %1398, %v1325
      %v1400 = vpop.permute.xlu0 %1399
      %1402 = vset.pattern.permute.xlu0 0
      %1403 = vperm.xlu0 %1402, %v1329
      %v1404 = vpop.permute.xlu0 %1403
      %1406 = vset.pattern.permute.xlu0 0
      %1407 = vperm.xlu0 %1406, %v1333
      %v1408 = vpop.permute.xlu0 %1407
      %v1410 = vmul.f32 %v1336, %v799
      %v1411 = vmul.f32 %v1336, %v800
      %v1412 = vmul.f32 %v1340, %v801
      %v1413 = vmul.f32 %v1340, %v802
      %v1414 = vmul.f32 %v1344, %v803
      %v1415 = vmul.f32 %v1344, %v804
      %v1416 = vmul.f32 %v1348, %v805
      %v1417 = vmul.f32 %v1348, %v806
      %v1418 = vmul.f32 %v1352, %v807
      %v1419 = vmul.f32 %v1352, %v808
      %v1420 = vmul.f32 %v1356, %v809
      %v1421 = vmul.f32 %v1356, %v810
      %v1422 = vmul.f32 %v1360, %v811
      %v1423 = vmul.f32 %v1360, %v812
      %v1424 = vmul.f32 %v1364, %v813
      %v1425 = vmul.f32 %v1364, %v814
      %v1426 = vmul.f32 %v1368, %v815
      %v1427 = vmul.f32 %v1368, %v816
      %v1428 = vmul.f32 %v1372, %v817
      %v1429 = vmul.f32 %v1372, %v818
      %v1430 = vmul.f32 %v1376, %v819
      %v1431 = vmul.f32 %v1376, %v820
      %v1432 = vmul.f32 %v1380, %v821
      %v1433 = vmul.f32 %v1380, %v822
      %v1434 = vmul.f32 %v1384, %v823
      %v1435 = vmul.f32 %v1384, %v824
      %v1436 = vmul.f32 %v1388, %v825
      %v1437 = vmul.f32 %v1388, %v826
      %v1438 = vmul.f32 %v1392, %v827
      %v1439 = vmul.f32 %v1392, %v828
      %v1440 = vmul.f32 %v1396, %v829
      %v1441 = vmul.f32 %v1396, %v830
      %v1442 = vmul.f32 %v1400, %v831
      %v1443 = vmul.f32 %v1400, %v832
      %v1444 = vmul.f32 %v1404, %v833
      %v1445 = vmul.f32 %v1404, %v834
      %v1446 = vmul.f32 %v1408, %v835
      %v1447 = vmul.f32 %v1408, %v836
      %v1448 = vsel %vm837, %v1410, 0.0
      %v1449 = vsel %vm837, %v1412, 0.0
      %v1450 = vadd.f32 %v1448, %v1449
      %v1451 = vsel %vm837, %v1414, 0.0
      %v1452 = vadd.f32 %v1450, %v1451
      %v1453 = vsel %vm837, %v1416, 0.0
      %v1454 = vadd.f32 %v1452, %v1453
      %v1455 = vsel %vm837, %v1418, 0.0
      %v1456 = vadd.f32 %v1454, %v1455
      %v1457 = vsel %vm837, %v1420, 0.0
      %v1458 = vadd.f32 %v1456, %v1457
      %v1459 = vsel %vm837, %v1422, 0.0
      %v1460 = vadd.f32 %v1458, %v1459
      %v1461 = vsel %vm837, %v1424, 0.0
      %v1462 = vadd.f32 %v1460, %v1461
      %v1463 = vsel %vm837, %v1426, 0.0
      %v1464 = vadd.f32 %v1462, %v1463
      %v1465 = vsel %vm837, %v1428, 0.0
      %v1466 = vadd.f32 %v1464, %v1465
      %v1467 = vsel %vm837, %v1430, 0.0
      %v1468 = vadd.f32 %v1466, %v1467
      %v1469 = vsel %vm837, %v1432, 0.0
      %v1470 = vadd.f32 %v1468, %v1469
      %v1471 = vsel %vm837, %v1434, 0.0
      %v1472 = vadd.f32 %v1470, %v1471
      %v1473 = vsel %vm837, %v1436, 0.0
      %v1474 = vadd.f32 %v1472, %v1473
      %v1475 = vsel %vm837, %v1438, 0.0
      %v1476 = vadd.f32 %v1474, %v1475
      %v1477 = vsel %vm837, %v1440, 0.0
      %v1478 = vadd.f32 %v1476, %v1477
      %v1479 = vsel %vm837, %v1442, 0.0
      %v1480 = vadd.f32 %v1478, %v1479
      %v1481 = vsel %vm837, %v1444, 0.0
      %v1482 = vadd.f32 %v1480, %v1481
      %v1483 = vsel %vm837, %v1446, 0.0
      %v1484 = vadd.f32 %v1482, %v1483
      %v1485 = vsel %vm837, %v1411, 0.0
      %v1486 = vsel %vm837, %v1413, 0.0
      %v1487 = vadd.f32 %v1485, %v1486
      %v1488 = vsel %vm837, %v1415, 0.0
      %v1489 = vadd.f32 %v1487, %v1488
      %v1490 = vsel %vm837, %v1417, 0.0
      %v1491 = vadd.f32 %v1489, %v1490
      %v1492 = vsel %vm837, %v1419, 0.0
      %v1493 = vadd.f32 %v1491, %v1492
      %v1494 = vsel %vm837, %v1421, 0.0
      %v1495 = vadd.f32 %v1493, %v1494
      %v1496 = vsel %vm837, %v1423, 0.0
      %v1497 = vadd.f32 %v1495, %v1496
      %v1498 = vsel %vm837, %v1425, 0.0
      %v1499 = vadd.f32 %v1497, %v1498
      %v1500 = vsel %vm837, %v1427, 0.0
      %v1501 = vadd.f32 %v1499, %v1500
      %v1502 = vsel %vm837, %v1429, 0.0
      %v1503 = vadd.f32 %v1501, %v1502
      %v1504 = vsel %vm837, %v1431, 0.0
      %v1505 = vadd.f32 %v1503, %v1504
      %v1506 = vsel %vm837, %v1433, 0.0
      %v1507 = vadd.f32 %v1505, %v1506
      %v1508 = vsel %vm837, %v1435, 0.0
      %v1509 = vadd.f32 %v1507, %v1508
      %v1510 = vsel %vm837, %v1437, 0.0
      %v1511 = vadd.f32 %v1509, %v1510
      %v1512 = vsel %vm837, %v1439, 0.0
      %v1513 = vadd.f32 %v1511, %v1512
      %v1514 = vsel %vm837, %v1441, 0.0
      %v1515 = vadd.f32 %v1513, %v1514
      %v1516 = vsel %vm837, %v1443, 0.0
      %v1517 = vadd.f32 %v1515, %v1516
      %v1518 = vsel %vm837, %v1445, 0.0
      %v1519 = vadd.f32 %v1517, %v1518
      %v1520 = vsel %vm837, %v1447, 0.0
      %v1521 = vadd.f32 %v1519, %v1520
      %v1522 = vmul.f32 %v1484, %v1218
      %v1523 = vmul.f32 %v1521, %v1219
      %v1524 = vsel %vm837, %v1522, 0.0
      %v1525 = vsel %vm837, %v1523, 0.0
      %v1526 = vadd.f32 %v1524, %v1525
      %1527 = vadd.xlane.f32.xlu0 %v1526
      %v1528 = vpop.xlane.xlu0 %1527
      %v1529 = vrot.slane %v1528, 4
      %v1530 = vadd.f32 %v1528, %v1529
      %v1531 = vrot.slane %v1530, 2
      %v1532 = vadd.f32 %v1530, %v1531
      %v1533 = vrot.slane %v1532, 1
      %v1534 = vadd.f32 %v1532, %v1533
      %s1535 = vtos %v1534
      %v1536 = vsel %vm837, %v1484, 0.0
      %v1537 = vsel %vm837, %v1521, 0.0
      %v1538 = vadd.f32 %v1536, %v1537
      %1539 = vadd.xlane.f32.xlu0 %v1538
      %v1540 = vpop.xlane.xlu0 %1539
      %v1541 = vrot.slane %v1540, 4
      %v1542 = vadd.f32 %v1540, %v1541
      %v1543 = vrot.slane %v1542, 2
      %v1544 = vadd.f32 %v1542, %v1543
      %v1545 = vrot.slane %v1544, 1
      %v1546 = vadd.f32 %v1544, %v1545
      %s1547 = vtos %v1546
      %v1548 = vlaneseq
      %v1549 = vshrl.u32 %v1548, 7
      %vm1550 = vcmp.eq.s32.totalorder %v1549, 0
      %vm1551 = vcmp.eq.s32.totalorder %v1549, 1
      %v1552 = vstv %s1547
      %v1553 = vsel %vm1551, %v1552, 0.0
      %v1554 = vstv %s1535
      %v1555 = vsel %vm1550, %v1554, %v1553
      %1556 = vst [vmem:[%s267] sm:$0xff] %v1555
      %p1557 = scmp.lt.s32.totalorder %s19, 1
      %s1558 = scalar_select %p1557, %s19, 1
      %p1559 = scmp.lt.s32.totalorder %s20, 0
      %s1560 = scalar_select %p1559, %s20, 0
      %s1561 = sadd.s32 %s1560, %s1558
      %s1562 = smul.addr %s1561, 8
      %s1563 = scalar_lea.vmem %s4, %s1562
      // Predicated region
      $region37: #{criterion_cross_entropy.1} parent=35 // pred_check
        %p1564 = pneg %p145
      $region38: #{criterion_cross_entropy.1} parent=35 // pred_check_branch
        %1566 = sbr.rel (%p1564) target = $region40
      $region39: #{criterion_cross_entropy.1} parent=35 // pred_region
        _
      $region40: #{criterion_cross_entropy.1} parent=35 // pred_fallthru
        _
    $region36: #{criterion_cross_entropy.1} parent=5 // pred_fallthru
      _
    %p1567 = scmp.le.s32.totalorder 2, %s10
    // Predicated region
    $region41: #{criterion_cross_entropy.1} parent=5 // pred_check
      %p1568 = pneg %p1567
    $region42: #{criterion_cross_entropy.1} parent=5 // pred_check_branch
      %1570 = sbr.rel (%p1568) target = $region44
    $region43: #{criterion_cross_entropy.1} parent=5 // pred_region
      %s1571 = ssub.s32 %s10, 2
      // Predicated region
      $region45: #{criterion_cross_entropy.1} parent=43 // pred_check
        %p1572 = pneg %p151
      $region46: #{criterion_cross_entropy.1} parent=43 // pred_check_branch
        %1574 = sbr.rel (%p1572) target = $region48
      $region47: #{criterion_cross_entropy.1} parent=43 // pred_region
        %p1575 = scmp.lt.s32.totalorder %s21, 1
        %s1576 = scalar_select %p1575, %s21, 1
        %p1577 = scmp.lt.s32.totalorder %s22, 0
        %s1578 = scalar_select %p1577, %s22, 0
        %s1579 = sadd.s32 %s1578, %s1576
        %s1580 = smul.addr %s1579, 8
        %s1581 = scalar_lea.vmem %s4, %s1580
      $region48: #{criterion_cross_entropy.1} parent=43 // pred_fallthru
        _
    $region44: #{criterion_cross_entropy.1} parent=5 // pred_fallthru
      _
  $region6: #{criterion_cross_entropy.1} parent=0 // loop_footer
    %s14 = sadd.s32 1, %s10
  $region7: #{criterion_cross_entropy.1} parent=0 // loop_footer_branch
    %9 = sbr.rel target = $region3
  $region8: #{criterion_cross_entropy.1} parent=0 // loop_exit
    _

</llo_original>
